<compile_context>
chip_gen: v7x
topology: tpu7x:2x2x1
jax: 0.10.0
libtpu: 0.0.40
codegen_flags: <defaults>
</compile_context>

<pallas_src>
import numpy as np
import jax
import jax.numpy as jnp
from jax.experimental import pallas as pl
from jax.experimental.pallas import tpu as pltpu

_PI = float(np.pi)
_HALF_PI = float(np.pi / 2.0)
_QUARTER_PI = float(np.pi / 4.0)
_TAN_PI_8 = float(np.tan(np.pi / 8.0))


def _atan2(y, x):
    """Elementwise atan2(y, x) matching torch.angle (range [-pi, pi]).

    VPU/EUP-only: one divide total (merged range-reduction divide) plus an odd
    w^11 Horner polynomial (max error ~1e-6 rad over the reduced range).
    """
    ax = jnp.abs(x)
    ay = jnp.abs(y)
    swap = ay > ax
    num = jnp.minimum(ax, ay)
    den = jnp.maximum(ax, ay)
    # atan(z) = pi/4 + atan((z-1)/(z+1)) for z = num/den > tan(pi/8),
    # expressed without computing z first so only one divide is issued.
    reduce_ = num > den * _TAN_PI_8
    wn = jnp.where(reduce_, num - den, num)
    wd = jnp.where(reduce_, num + den, den)
    wd = jnp.where(wd == 0.0, 1.0, wd)        # guard 0/0; fixed up below
    w = wn / wd
    w2 = w * w
    poly = jnp.float32(-1.0 / 11.0)
    poly = poly * w2 + (1.0 / 9.0)
    poly = poly * w2 + (-1.0 / 7.0)
    poly = poly * w2 + (1.0 / 5.0)
    poly = poly * w2 + (-1.0 / 3.0)
    poly = poly * w2 + 1.0
    a = w * poly
    a = jnp.where(reduce_, _QUARTER_PI + a, a)
    a = jnp.where(swap, _HALF_PI - a, a)
    a = jnp.where(x < 0.0, _PI - a, a)
    a = jnp.where(y < 0.0, -a, a)
    return jnp.where((ax == 0.0) & (ay == 0.0), 0.0, a)


def _round_up(x, m):
    return ((x + m - 1) // m) * m


def _choose_planes_per_block(num_planes, H, Wfp):
    """Planes per grid step: as large as comfortably fits VMEM, preferring an
    even grid length >= 2 so v7x's two TensorCores both get whole shares."""
    budget = 16 * 1024 * 1024            # rough f32 intermediate budget / step
    per_plane = H * Wfp * 128            # ~8 live f32 arrays, pred + target
    cap = max(1, budget // per_plane)
    divs = [d for d in range(1, num_planes + 1)
            if num_planes % d == 0 and d <= cap and (2 * d * H) % 8 == 0]
    if not divs:
        return num_planes                # G == 1 fallback (full-dim block)
    even_multi = [d for d in divs
                  if (num_planes // d) >= 2 and (num_planes // d) % 2 == 0]
    if even_multi:
        return max(even_multi)
    multi = [d for d in divs if num_planes // d >= 2]
    return max(multi) if multi else max(divs)


def fft_loss(pred, target, loss_weight=1.0, reduction="mean"):
    """pred, target: (N, C, H, W). Returns scalar FFT amplitude+phase L1 loss."""
    del loss_weight  # stored but never applied in the reference forward
    N, C, H, W = pred.shape
    P = N * C
    Wf = W // 2 + 1
    Wfp = _round_up(Wf, 128)             # lane-dense padded rFFT width
    B = _choose_planes_per_block(P, H, Wfp)
    G = P // B
    NB = 2 * B                           # pred + target planes per grid step
    BH = B * H
    NBH = NB * H

    # ---- DFT factor matrices, baked at trace time (float64 -> bf16) --------
    w_idx = np.arange(W, dtype=np.float64)[:, None]
    k_idx = np.arange(Wf, dtype=np.float64)[None, :]
    ang_w = 2.0 * np.pi * w_idx * k_idx / W
    cat = np.zeros((W, 2 * Wfp), dtype=np.float32)
    cat[:, :Wf] = np.cos(ang_w)                     # -> Yr
    cat[:, Wfp:Wfp + Wf] = -np.sin(ang_w)           # -> Yi   (padded cols stay 0)

    h_idx = np.arange(H, dtype=np.float64)
    ang_h = 2.0 * np.pi * np.outer(h_idx, h_idx) / H
    ch = np.cos(ang_h).astype(np.float32)           # (H, H)
    sh = np.sin(ang_h).astype(np.float32)
    chb = np.broadcast_to(ch, (NB, H, H)).copy()    # tiny; pre-broadcast for the
    shb = np.broadcast_to(sh, (NB, H, H)).copy()    # batched column-pass matmul

    cat_b = jnp.asarray(cat).astype(jnp.bfloat16)
    chb_b = jnp.asarray(chb).astype(jnp.bfloat16)
    shb_b = jnp.asarray(shb).astype(jnp.bfloat16)

    # ---- stack pred & target planes of each group into one block -----------
    pred_g = pred.astype(jnp.bfloat16).reshape(G, BH, W)
    targ_g = target.astype(jnp.bfloat16).reshape(G, BH, W)
    x = jnp.concatenate([pred_g, targ_g], axis=1).reshape(G * NBH, W)

    def kernel(cat_ref, chb_ref, shb_ref, x_ref, out_ref):
        x2 = x_ref[...]                                            # (NBH, W) bf16
        # Row (width) rFFT: one fused matmul -> [Yr | Yi] side by side.
        y = jnp.dot(x2, cat_ref[...], preferred_element_type=jnp.float32)
        y3 = y.astype(jnp.bfloat16).reshape(NB, H, 2 * Wfp)
        # Column (height) full DFT per plane: Z = (CH - i*SH) @ (Yr + i*Yi).
        a = jnp.einsum("bhk,bkw->bhw", chb_ref[...], y3,
                       preferred_element_type=jnp.float32)         # [CH@Yr|CH@Yi]
        bm = jnp.einsum("bhk,bkw->bhw", shb_ref[...], y3,
                        preferred_element_type=jnp.float32)        # [SH@Yr|SH@Yi]
        zr = a[:, :, :Wfp] + bm[:, :, Wfp:]
        zi = a[:, :, Wfp:] - bm[:, :, :Wfp]

        # Zero the imaginary part of structurally-real bins (DC / Nyquist) so
        # their phase is exactly 0 or pi like torch.angle of the exact rfft2,
        # instead of flipping to ~+/-pi from matmul-DFT rounding noise.
        rows = jax.lax.broadcasted_iota(jnp.int32, (H, Wfp), 0)
        cols = jax.lax.broadcasted_iota(jnp.int32, (H, Wfp), 1)
        row_real = rows == 0
        if H % 2 == 0:
            row_real = row_real | (rows == H // 2)
        col_real = cols == 0
        if W % 2 == 0:
            col_real = col_real | (cols == W // 2)
        keep_imag = jnp.where(row_real & col_real, 0.0, 1.0).astype(jnp.float32)
        zi = zi * keep_imag

        zr2 = zr.reshape(NBH, Wfp)
        zi2 = zi.reshape(NBH, Wfp)
        pr, tr = zr2[:BH], zr2[BH:]
        pi_, ti_ = zi2[:BH], zi2[BH:]

        # Padded lanes (kx >= Wf) are exactly zero in both spectra, so they add
        # 0 to both L1 sums and the dense padded tiles can be summed directly.
        amp_diff = jnp.abs(jnp.sqrt(pr * pr + pi_ * pi_) -
                           jnp.sqrt(tr * tr + ti_ * ti_))
        pha_diff = jnp.abs(_atan2(pi_, pr) - _atan2(ti_, tr))
        amp_sum = jnp.sum(amp_diff)
        pha_sum = jnp.sum(pha_diff)

        out_ref[0, 0, :, :] = jnp.full((8, 128), amp_sum, dtype=jnp.float32)
        out_ref[0, 1, :, :] = jnp.full((8, 128), pha_sum, dtype=jnp.float32)

    partials = pl.pallas_call(
        kernel,
        out_shape=jax.ShapeDtypeStruct((G, 2, 8, 128), jnp.float32),
        grid=(G,),
        in_specs=[
            pl.BlockSpec((W, 2 * Wfp), lambda g: (0, 0)),       # [cos|-sin] row factors
            pl.BlockSpec((NB, H, H), lambda g: (0, 0, 0)),      # column cos factors
            pl.BlockSpec((NB, H, H), lambda g: (0, 0, 0)),      # column sin factors
            pl.BlockSpec((NBH, W), lambda g: (g, 0)),           # stacked pred+target planes
        ],
        out_specs=pl.BlockSpec((1, 2, 8, 128), lambda g: (g, 0, 0, 0)),
        compiler_params=pltpu.CompilerParams(
            dimension_semantics=("parallel",),
            vmem_limit_bytes=48 * 1024 * 1024,
        ),
    )(cat_b, chb_b, shb_b, x)

    amp_sum = jnp.sum(partials[:, 0, 0, 0])
    pha_sum = jnp.sum(partials[:, 1, 0, 0])
    if reduction == "mean":
        nel = P * H * Wf
        return (amp_sum + pha_sum) / nel
    # TODO(synk): reduction='none' (per-element tensor output) is not implemented.
    return amp_sum + pha_sum


def _reference_fft_loss(pred, target, reduction="mean"):
    """Pure-JAX reference mirroring the PyTorch FFTLoss forward."""
    pf = jnp.fft.rfft2(pred.astype(jnp.float32))
    tf = jnp.fft.rfft2(target.astype(jnp.float32))
    amp = jnp.abs(jnp.abs(pf) - jnp.abs(tf))
    pha = jnp.abs(jnp.angle(pf) - jnp.angle(tf))
    if reduction == "mean":
        return jnp.mean(amp) + jnp.mean(pha)
    return jnp.sum(amp) + jnp.sum(pha)


if __name__ == "__main__":
    key = jax.random.PRNGKey(0)
    k1, k2 = jax.random.split(key)
    N, C, H, W = 2, 4, 16, 16
    pred = jax.random.uniform(k1, (N, C, H, W), dtype=jnp.float32)
    target = jax.random.uniform(k2, (N, C, H, W), dtype=jnp.float32)

    loss = jax.block_until_ready(jax.jit(fft_loss)(pred, target))
    ref = jax.block_until_ready(_reference_fft_loss(pred, target))

    assert loss.shape == () and bool(jnp.isfinite(loss))
    # bf16-operand matmul-DFT vs exact f32 FFT: a few percent of slack.
    assert abs(float(loss) - float(ref)) < 0.05 * abs(float(ref)) + 0.2, \
        (float(loss), float(ref))
    print("KERNEL_OK")
</pallas_src>

<mosaic_0001>
module attributes {stable_mosaic.version = 11 : i64} {
  func.func @kernel(%arg0: i32, %arg1: memref<16x256xbf16, #tpu.memory_space<vmem>>, %arg2: memref<8x16x16xbf16, #tpu.memory_space<vmem>>, %arg3: memref<8x16x16xbf16, #tpu.memory_space<vmem>>, %arg4: memref<128x16xbf16, #tpu.memory_space<vmem>>, %arg5: memref<1x2x8x128xf32, #tpu.memory_space<vmem>>) attributes {dimension_semantics = [#tpu.dimension_semantics<parallel>], iteration_bounds = array<i64: 2>, scalar_prefetch = 0 : i64, scratch_operands = 0 : i64, tpu.core_type = #tpu.core_type<tc>, window_params = [{pipeline_mode = #tpu.pipeline_mode<synchronous>, transform_indices = @transform_0, window_bounds = array<i64: 16, 256>}, {pipeline_mode = #tpu.pipeline_mode<synchronous>, transform_indices = @transform_1, window_bounds = array<i64: 8, 16, 16>}, {pipeline_mode = #tpu.pipeline_mode<synchronous>, transform_indices = @transform_2, window_bounds = array<i64: 8, 16, 16>}, {transform_indices = @transform_3, window_bounds = array<i64: 128, 16>}, {transform_indices = @transform_4, window_bounds = array<i64: 1, 2, 8, 128>}]} {
    %c0 = arith.constant 0 : index
    %c0_0 = arith.constant 0 : index
    %0 = vector.load %arg4[%c0, %c0_0] : memref<128x16xbf16, #tpu.memory_space<vmem>>, vector<128x16xbf16>
    %c0_1 = arith.constant 0 : index
    %c0_2 = arith.constant 0 : index
    %1 = vector.load %arg1[%c0_1, %c0_2] : memref<16x256xbf16, #tpu.memory_space<vmem>>, vector<16x256xbf16>
    %cst = arith.constant dense<0.000000e+00> : vector<128x256xf32>
    %2 = tpu.matmul %0, %1, %cst {dimension_numbers = #tpu.dot_dimension_numbers<[1], [0], [0], [1], [0, 0, 1, 1], [], []>} : vector<128x16xbf16>, vector<16x256xbf16>, vector<128x256xf32> -> vector<128x256xf32>
    %3 = arith.truncf %2 : vector<128x256xf32> to vector<128x256xbf16>
    %4 = vector.shape_cast %3 : vector<128x256xbf16> to vector<8x16x256xbf16>
    %c0_3 = arith.constant 0 : index
    %c0_4 = arith.constant 0 : index
    %c0_5 = arith.constant 0 : index
    %5 = vector.load %arg2[%c0_3, %c0_4, %c0_5] : memref<8x16x16xbf16, #tpu.memory_space<vmem>>, vector<8x16x16xbf16>
    "tpu.trace_start"() <{level = 10 : i32, message = "bhk,bkw->bhw"}> : () -> ()
    %cst_6 = arith.constant dense<0.000000e+00> : vector<8x16x256xf32>
    %6 = tpu.matmul %5, %4, %cst_6 {dimension_numbers = #tpu.dot_dimension_numbers<[2], [1], [1], [2], [0, 0, 0, 1, 1, 2], [0], [0]>} : vector<8x16x16xbf16>, vector<8x16x256xbf16>, vector<8x16x256xf32> -> vector<8x16x256xf32>
    "tpu.trace_stop"() : () -> ()
    %c0_7 = arith.constant 0 : index
    %c0_8 = arith.constant 0 : index
    %c0_9 = arith.constant 0 : index
    %7 = vector.load %arg3[%c0_7, %c0_8, %c0_9] : memref<8x16x16xbf16, #tpu.memory_space<vmem>>, vector<8x16x16xbf16>
    "tpu.trace_start"() <{level = 10 : i32, message = "bhk,bkw->bhw"}> : () -> ()
    %cst_10 = arith.constant dense<0.000000e+00> : vector<8x16x256xf32>
    %8 = tpu.matmul %7, %4, %cst_10 {dimension_numbers = #tpu.dot_dimension_numbers<[2], [1], [1], [2], [0, 0, 0, 1, 1, 2], [0], [0]>} : vector<8x16x16xbf16>, vector<8x16x256xbf16>, vector<8x16x256xf32> -> vector<8x16x256xf32>
    "tpu.trace_stop"() : () -> ()
    %9 = vector.extract_strided_slice %6 {offsets = [0, 0, 0], sizes = [8, 16, 128], strides = [1, 1, 1]} : vector<8x16x256xf32> to vector<8x16x128xf32>
    %10 = vector.extract_strided_slice %8 {offsets = [0, 0, 128], sizes = [8, 16, 128], strides = [1, 1, 1]} : vector<8x16x256xf32> to vector<8x16x128xf32>
    %11 = arith.addf %9, %10 : vector<8x16x128xf32>
    %12 = vector.extract_strided_slice %6 {offsets = [0, 0, 128], sizes = [8, 16, 128], strides = [1, 1, 1]} : vector<8x16x256xf32> to vector<8x16x128xf32>
    %13 = vector.extract_strided_slice %8 {offsets = [0, 0, 0], sizes = [8, 16, 128], strides = [1, 1, 1]} : vector<8x16x256xf32> to vector<8x16x128xf32>
    %14 = arith.subf %12, %13 : vector<8x16x128xf32>
    %15 = tpu.iota {dimensions = array<i32: 0>} : vector<16x128xi32>
    %16 = tpu.iota {dimensions = array<i32: 1>} : vector<16x128xi32>
    %c0_i32 = arith.constant 0 : i32
    %17 = vector.broadcast %c0_i32 : i32 to vector<16x128xi32>
    %18 = arith.cmpi eq, %15, %17 : vector<16x128xi32>
    %c8_i32 = arith.constant 8 : i32
    %19 = vector.broadcast %c8_i32 : i32 to vector<16x128xi32>
    %20 = arith.cmpi eq, %15, %19 : vector<16x128xi32>
    %21 = arith.ori %18, %20 : vector<16x128xi1>
    %c0_i32_11 = arith.constant 0 : i32
    %22 = vector.broadcast %c0_i32_11 : i32 to vector<16x128xi32>
    %23 = arith.cmpi eq, %16, %22 : vector<16x128xi32>
    %c8_i32_12 = arith.constant 8 : i32
    %24 = vector.broadcast %c8_i32_12 : i32 to vector<16x128xi32>
    %25 = arith.cmpi eq, %16, %24 : vector<16x128xi32>
    %26 = arith.ori %23, %25 : vector<16x128xi1>
    %27 = arith.andi %21, %26 : vector<16x128xi1>
    %cst_13 = arith.constant 0.000000e+00 : f32
    %cst_14 = arith.constant 1.000000e+00 : f32
    %28 = vector.broadcast %cst_13 : f32 to vector<16x128xf32>
    %29 = vector.broadcast %cst_14 : f32 to vector<16x128xf32>
    %30 = arith.select %27, %28, %29 : vector<16x128xi1>, vector<16x128xf32>
    %31 = vector.shape_cast %30 : vector<16x128xf32> to vector<1x16x128xf32>
    %32 = vector.broadcast %31 : vector<1x16x128xf32> to vector<8x16x128xf32>
    %33 = arith.mulf %14, %32 : vector<8x16x128xf32>
    %34 = vector.shape_cast %11 : vector<8x16x128xf32> to vector<128x128xf32>
    %35 = vector.shape_cast %33 : vector<8x16x128xf32> to vector<128x128xf32>
    %36 = vector.extract_strided_slice %34 {offsets = [0, 0], sizes = [64, 128], strides = [1, 1]} : vector<128x128xf32> to vector<64x128xf32>
    %37 = vector.extract_strided_slice %34 {offsets = [64, 0], sizes = [64, 128], strides = [1, 1]} : vector<128x128xf32> to vector<64x128xf32>
    %38 = vector.extract_strided_slice %35 {offsets = [0, 0], sizes = [64, 128], strides = [1, 1]} : vector<128x128xf32> to vector<64x128xf32>
    %39 = vector.extract_strided_slice %35 {offsets = [64, 0], sizes = [64, 128], strides = [1, 1]} : vector<128x128xf32> to vector<64x128xf32>
    %40 = arith.mulf %36, %36 : vector<64x128xf32>
    %41 = arith.mulf %38, %38 : vector<64x128xf32>
    %42 = arith.addf %40, %41 : vector<64x128xf32>
    %43 = math.sqrt %42 : vector<64x128xf32>
    %44 = arith.mulf %37, %37 : vector<64x128xf32>
    %45 = arith.mulf %39, %39 : vector<64x128xf32>
    %46 = arith.addf %44, %45 : vector<64x128xf32>
    %47 = math.sqrt %46 : vector<64x128xf32>
    %48 = arith.subf %43, %47 : vector<64x128xf32>
    %49 = math.absf %48 : vector<64x128xf32>
    %50 = math.absf %36 : vector<64x128xf32>
    %51 = math.absf %38 : vector<64x128xf32>
    %52 = arith.cmpf ogt, %51, %50 : vector<64x128xf32>
    %53 = arith.minimumf %50, %51 : vector<64x128xf32>
    %54 = arith.maximumf %50, %51 : vector<64x128xf32>
    %cst_15 = arith.constant 0.414213568 : f32
    %55 = vector.broadcast %cst_15 : f32 to vector<64x128xf32>
    %56 = arith.mulf %54, %55 : vector<64x128xf32>
    %57 = arith.cmpf ogt, %53, %56 : vector<64x128xf32>
    %58 = arith.subf %53, %54 : vector<64x128xf32>
    %59 = arith.select %57, %58, %53 : vector<64x128xi1>, vector<64x128xf32>
    %60 = arith.addf %53, %54 : vector<64x128xf32>
    %61 = arith.select %57, %60, %54 : vector<64x128xi1>, vector<64x128xf32>
    %cst_16 = arith.constant 0.000000e+00 : f32
    %62 = vector.broadcast %cst_16 : f32 to vector<64x128xf32>
    %63 = arith.cmpf oeq, %61, %62 : vector<64x128xf32>
    %cst_17 = arith.constant 1.000000e+00 : f32
    %64 = vector.broadcast %cst_17 : f32 to vector<64x128xf32>
    %65 = arith.select %63, %64, %61 : vector<64x128xi1>, vector<64x128xf32>
    %66 = arith.divf %59, %65 : vector<64x128xf32>
    %67 = arith.mulf %66, %66 : vector<64x128xf32>
    %cst_18 = arith.constant -0.0909090936 : f32
    %68 = vector.broadcast %cst_18 : f32 to vector<64x128xf32>
    %69 = arith.mulf %68, %67 : vector<64x128xf32>
    %cst_19 = arith.constant 0.111111112 : f32
    %70 = vector.broadcast %cst_19 : f32 to vector<64x128xf32>
    %71 = arith.addf %69, %70 : vector<64x128xf32>
    %72 = arith.mulf %71, %67 : vector<64x128xf32>
    %cst_20 = arith.constant -0.142857149 : f32
    %73 = vector.broadcast %cst_20 : f32 to vector<64x128xf32>
    %74 = arith.addf %72, %73 : vector<64x128xf32>
    %75 = arith.mulf %74, %67 : vector<64x128xf32>
    %cst_21 = arith.constant 2.000000e-01 : f32
    %76 = vector.broadcast %cst_21 : f32 to vector<64x128xf32>
    %77 = arith.addf %75, %76 : vector<64x128xf32>
    %78 = arith.mulf %77, %67 : vector<64x128xf32>
    %cst_22 = arith.constant -0.333333343 : f32
    %79 = vector.broadcast %cst_22 : f32 to vector<64x128xf32>
    %80 = arith.addf %78, %79 : vector<64x128xf32>
    %81 = arith.mulf %80, %67 : vector<64x128xf32>
    %cst_23 = arith.constant 1.000000e+00 : f32
    %82 = vector.broadcast %cst_23 : f32 to vector<64x128xf32>
    %83 = arith.addf %81, %82 : vector<64x128xf32>
    %84 = arith.mulf %66, %83 : vector<64x128xf32>
    %cst_24 = arith.constant 0.785398185 : f32
    %85 = vector.broadcast %cst_24 : f32 to vector<64x128xf32>
    %86 = arith.addf %85, %84 : vector<64x128xf32>
    %87 = arith.select %57, %86, %84 : vector<64x128xi1>, vector<64x128xf32>
    %cst_25 = arith.constant 1.57079637 : f32
    %88 = vector.broadcast %cst_25 : f32 to vector<64x128xf32>
    %89 = arith.subf %88, %87 : vector<64x128xf32>
    %90 = arith.select %52, %89, %87 : vector<64x128xi1>, vector<64x128xf32>
    %cst_26 = arith.constant 0.000000e+00 : f32
    %91 = vector.broadcast %cst_26 : f32 to vector<64x128xf32>
    %92 = arith.cmpf olt, %36, %91 : vector<64x128xf32>
    %cst_27 = arith.constant 3.14159274 : f32
    %93 = vector.broadcast %cst_27 : f32 to vector<64x128xf32>
    %94 = arith.subf %93, %90 : vector<64x128xf32>
    %95 = arith.select %92, %94, %90 : vector<64x128xi1>, vector<64x128xf32>
    %cst_28 = arith.constant 0.000000e+00 : f32
    %96 = vector.broadcast %cst_28 : f32 to vector<64x128xf32>
    %97 = arith.cmpf olt, %38, %96 : vector<64x128xf32>
    %cst_29 = arith.constant 0.000000e+00 : f32
    %98 = vector.broadcast %cst_29 : f32 to vector<64x128xf32>
    %99 = arith.subf %98, %95 : vector<64x128xf32>
    %100 = arith.select %97, %99, %95 : vector<64x128xi1>, vector<64x128xf32>
    %cst_30 = arith.constant 0.000000e+00 : f32
    %101 = vector.broadcast %cst_30 : f32 to vector<64x128xf32>
    %102 = arith.cmpf oeq, %50, %101 : vector<64x128xf32>
    %cst_31 = arith.constant 0.000000e+00 : f32
    %103 = vector.broadcast %cst_31 : f32 to vector<64x128xf32>
    %104 = arith.cmpf oeq, %51, %103 : vector<64x128xf32>
    %105 = arith.andi %102, %104 : vector<64x128xi1>
    %cst_32 = arith.constant 0.000000e+00 : f32
    %106 = vector.broadcast %cst_32 : f32 to vector<64x128xf32>
    %107 = arith.select %105, %106, %100 : vector<64x128xi1>, vector<64x128xf32>
    %108 = math.absf %37 : vector<64x128xf32>
    %109 = math.absf %39 : vector<64x128xf32>
    %110 = arith.cmpf ogt, %109, %108 : vector<64x128xf32>
    %111 = arith.minimumf %108, %109 : vector<64x128xf32>
    %112 = arith.maximumf %108, %109 : vector<64x128xf32>
    %cst_33 = arith.constant 0.414213568 : f32
    %113 = vector.broadcast %cst_33 : f32 to vector<64x128xf32>
    %114 = arith.mulf %112, %113 : vector<64x128xf32>
    %115 = arith.cmpf ogt, %111, %114 : vector<64x128xf32>
    %116 = arith.subf %111, %112 : vector<64x128xf32>
    %117 = arith.select %115, %116, %111 : vector<64x128xi1>, vector<64x128xf32>
    %118 = arith.addf %111, %112 : vector<64x128xf32>
    %119 = arith.select %115, %118, %112 : vector<64x128xi1>, vector<64x128xf32>
    %cst_34 = arith.constant 0.000000e+00 : f32
    %120 = vector.broadcast %cst_34 : f32 to vector<64x128xf32>
    %121 = arith.cmpf oeq, %119, %120 : vector<64x128xf32>
    %cst_35 = arith.constant 1.000000e+00 : f32
    %122 = vector.broadcast %cst_35 : f32 to vector<64x128xf32>
    %123 = arith.select %121, %122, %119 : vector<64x128xi1>, vector<64x128xf32>
    %124 = arith.divf %117, %123 : vector<64x128xf32>
    %125 = arith.mulf %124, %124 : vector<64x128xf32>
    %cst_36 = arith.constant -0.0909090936 : f32
    %126 = vector.broadcast %cst_36 : f32 to vector<64x128xf32>
    %127 = arith.mulf %126, %125 : vector<64x128xf32>
    %cst_37 = arith.constant 0.111111112 : f32
    %128 = vector.broadcast %cst_37 : f32 to vector<64x128xf32>
    %129 = arith.addf %127, %128 : vector<64x128xf32>
    %130 = arith.mulf %129, %125 : vector<64x128xf32>
    %cst_38 = arith.constant -0.142857149 : f32
    %131 = vector.broadcast %cst_38 : f32 to vector<64x128xf32>
    %132 = arith.addf %130, %131 : vector<64x128xf32>
    %133 = arith.mulf %132, %125 : vector<64x128xf32>
    %cst_39 = arith.constant 2.000000e-01 : f32
    %134 = vector.broadcast %cst_39 : f32 to vector<64x128xf32>
    %135 = arith.addf %133, %134 : vector<64x128xf32>
    %136 = arith.mulf %135, %125 : vector<64x128xf32>
    %cst_40 = arith.constant -0.333333343 : f32
    %137 = vector.broadcast %cst_40 : f32 to vector<64x128xf32>
    %138 = arith.addf %136, %137 : vector<64x128xf32>
    %139 = arith.mulf %138, %125 : vector<64x128xf32>
    %cst_41 = arith.constant 1.000000e+00 : f32
    %140 = vector.broadcast %cst_41 : f32 to vector<64x128xf32>
    %141 = arith.addf %139, %140 : vector<64x128xf32>
    %142 = arith.mulf %124, %141 : vector<64x128xf32>
    %cst_42 = arith.constant 0.785398185 : f32
    %143 = vector.broadcast %cst_42 : f32 to vector<64x128xf32>
    %144 = arith.addf %143, %142 : vector<64x128xf32>
    %145 = arith.select %115, %144, %142 : vector<64x128xi1>, vector<64x128xf32>
    %cst_43 = arith.constant 1.57079637 : f32
    %146 = vector.broadcast %cst_43 : f32 to vector<64x128xf32>
    %147 = arith.subf %146, %145 : vector<64x128xf32>
    %148 = arith.select %110, %147, %145 : vector<64x128xi1>, vector<64x128xf32>
    %cst_44 = arith.constant 0.000000e+00 : f32
    %149 = vector.broadcast %cst_44 : f32 to vector<64x128xf32>
    %150 = arith.cmpf olt, %37, %149 : vector<64x128xf32>
    %cst_45 = arith.constant 3.14159274 : f32
    %151 = vector.broadcast %cst_45 : f32 to vector<64x128xf32>
    %152 = arith.subf %151, %148 : vector<64x128xf32>
    %153 = arith.select %150, %152, %148 : vector<64x128xi1>, vector<64x128xf32>
    %cst_46 = arith.constant 0.000000e+00 : f32
    %154 = vector.broadcast %cst_46 : f32 to vector<64x128xf32>
    %155 = arith.cmpf olt, %39, %154 : vector<64x128xf32>
    %cst_47 = arith.constant 0.000000e+00 : f32
    %156 = vector.broadcast %cst_47 : f32 to vector<64x128xf32>
    %157 = arith.subf %156, %153 : vector<64x128xf32>
    %158 = arith.select %155, %157, %153 : vector<64x128xi1>, vector<64x128xf32>
    %cst_48 = arith.constant 0.000000e+00 : f32
    %159 = vector.broadcast %cst_48 : f32 to vector<64x128xf32>
    %160 = arith.cmpf oeq, %108, %159 : vector<64x128xf32>
    %cst_49 = arith.constant 0.000000e+00 : f32
    %161 = vector.broadcast %cst_49 : f32 to vector<64x128xf32>
    %162 = arith.cmpf oeq, %109, %161 : vector<64x128xf32>
    %163 = arith.andi %160, %162 : vector<64x128xi1>
    %cst_50 = arith.constant 0.000000e+00 : f32
    %164 = vector.broadcast %cst_50 : f32 to vector<64x128xf32>
    %165 = arith.select %163, %164, %158 : vector<64x128xi1>, vector<64x128xf32>
    %166 = arith.subf %107, %165 : vector<64x128xf32>
    %167 = math.absf %166 : vector<64x128xf32>
    %168 = vector.shape_cast %49 : vector<64x128xf32> to vector<1x64x128xf32>
    %cst_51 = arith.constant dense<0.000000e+00> : vector<1xf32>
    %169 = vector.multi_reduction <add>, %168, %cst_51 [1, 2] : vector<1x64x128xf32> to vector<1xf32>
    %170 = vector.shape_cast %169 : vector<1xf32> to vector<1x1x1xf32>
    %171 = vector.extract %170[0, 0, 0] : f32 from vector<1x1x1xf32>
    %172 = vector.shape_cast %167 : vector<64x128xf32> to vector<1x64x128xf32>
    %cst_52 = arith.constant dense<0.000000e+00> : vector<1xf32>
    %173 = vector.multi_reduction <add>, %172, %cst_52 [1, 2] : vector<1x64x128xf32> to vector<1xf32>
    %174 = vector.shape_cast %173 : vector<1xf32> to vector<1x1x1xf32>
    %175 = vector.extract %174[0, 0, 0] : f32 from vector<1x1x1xf32>
    %176 = vector.broadcast %171 : f32 to vector<8x128xf32>
    %c0_53 = arith.constant 0 : index
    %c0_54 = arith.constant 0 : index
    %c0_55 = arith.constant 0 : index
    %c0_56 = arith.constant 0 : index
    %177 = vector.load %arg5[%c0_53, %c0_54, %c0_55, %c0_56] : memref<1x2x8x128xf32, #tpu.memory_space<vmem>>, vector<1x1x8x128xf32>
    %178 = vector.shape_cast %177 : vector<1x1x8x128xf32> to vector<8x128xf32>
    %179 = vector.shape_cast %176 : vector<8x128xf32> to vector<1x1x8x128xf32>
    tpu.vector_store %arg5[%c0_53, %c0_54, %c0_55, %c0_56], %179 {strides = array<i32>} : memref<1x2x8x128xf32, #tpu.memory_space<vmem>>, vector<1x1x8x128xf32>,
    %180 = vector.broadcast %175 : f32 to vector<8x128xf32>
    %c0_57 = arith.constant 0 : index
    %c1 = arith.constant 1 : index
    %c0_58 = arith.constant 0 : index
    %c0_59 = arith.constant 0 : index
    %181 = vector.load %arg5[%c0_57, %c1, %c0_58, %c0_59] : memref<1x2x8x128xf32, #tpu.memory_space<vmem>>, vector<1x1x8x128xf32>
    %182 = vector.shape_cast %181 : vector<1x1x8x128xf32> to vector<8x128xf32>
    %183 = vector.shape_cast %180 : vector<8x128xf32> to vector<1x1x8x128xf32>
    tpu.vector_store %arg5[%c0_57, %c1, %c0_58, %c0_59], %183 {strides = array<i32>} : memref<1x2x8x128xf32, #tpu.memory_space<vmem>>, vector<1x1x8x128xf32>,
    return
  }
  func.func @transform_0(%arg0: i32) -> (i32, i32) {
    %c0_i32 = arith.constant 0 : i32
    %c0_i32_0 = arith.constant 0 : i32
    %c0_i32_1 = arith.constant 0 : i32
    return %c0_i32, %c0_i32_0 : i32, i32
  }
  func.func @transform_1(%arg0: i32) -> (i32, i32, i32) {
    %c0_i32 = arith.constant 0 : i32
    %c0_i32_0 = arith.constant 0 : i32
    %c0_i32_1 = arith.constant 0 : i32
    %c0_i32_2 = arith.constant 0 : i32
    return %c0_i32, %c0_i32_0, %c0_i32_1 : i32, i32, i32
  }
  func.func @transform_2(%arg0: i32) -> (i32, i32, i32) {
    %c0_i32 = arith.constant 0 : i32
    %c0_i32_0 = arith.constant 0 : i32
    %c0_i32_1 = arith.constant 0 : i32
    %c0_i32_2 = arith.constant 0 : i32
    return %c0_i32, %c0_i32_0, %c0_i32_1 : i32, i32, i32
  }
  func.func @transform_3(%arg0: i32) -> (i32, i32) {
    %c0_i32 = arith.constant 0 : i32
    %c0_i32_0 = arith.constant 0 : i32
    return %arg0, %c0_i32 : i32, i32
  }
  func.func @transform_4(%arg0: i32) -> (i32, i32, i32, i32) {
    %c0_i32 = arith.constant 0 : i32
    %c0_i32_0 = arith.constant 0 : i32
    %c0_i32_1 = arith.constant 0 : i32
    %c0_i32_2 = arith.constant 0 : i32
    return %arg0, %c0_i32, %c0_i32_0, %c0_i32_1 : i32, i32, i32, i32
  }
}

</mosaic_0001>

<llo_original>
// kernel: fft_loss.1
$region0: #{fft_loss.1}
  #allocation0 [shape = 'u32[]', space=smem, size = 0x4, offset = 0x4, fixed_abs, tag = 'smem constant byte address 0x4 - core index']
  #allocation1 [shape = 'u32[144,128]{1,0:T(1,128)}', space=vmem, size = 0x12000, scoped, tag = 'internal scratch']
  %s0 = inlined_call_operand.vmem [shape: bf16[16,256], index: 0, kind: input, shape index: {}]
  %s1 = inlined_call_operand.vmem [shape: bf16[8,16,16], index: 1, kind: input, shape index: {}]
  %s2 = inlined_call_operand.vmem [shape: bf16[8,16,16], index: 2, kind: input, shape index: {}]
  %s3 = inlined_call_operand.vmem [shape: bf16[256,16], index: 3, kind: input, shape index: {}]
  %s4 = inlined_call_operand.vmem [shape: f32[2,2,8,128], index: 4, kind: output, shape index: {}]
  %s5 = sld [smem:[#allocation0]]
  $region49: #{fft_loss.1} parent=0
    _
  %s7 = ssub.s32 1, %s5
  %s8 = scalar_select 0, %s7, %s5
  loop: start=0, step=1, limit=4
  $region2: #{fft_loss.1} parent=0 // loop_pre_header
    _
  $region3: #{fft_loss.1} parent=0 // loop_header
    %s10 = sphi 0, %s14
    %p11 = scmp.ge.s32.totalorder %s10, 4
    %s18 = sphi 0, %s18
    %s20 = sphi 0, %s18
    %s21 = sphi 0, %s20
    %s35 = sphi 0, %s21
    %s39 = sphi 0, %s39
    %s41 = sphi 0, %s39
    %s42 = sphi 0, %s41
    %s56 = sphi 0, %s42
    %s60 = sphi 0, %s60
    %s62 = sphi 0, %s60
    %s63 = sphi 0, %s62
    %s77 = sphi 0, %s63
    %s83 = sphi 0, %s85
    %s86 = sphi 0, %s83
    %s87 = sphi 0, %s86
    %s103 = sphi 0, %s87
    %s109 = sphi 0, %s111
    %s112 = sphi 0, %s109
    %s113 = sphi 0, %s112
    %s129 = sphi 0, %s113
  $region4: #{fft_loss.1} parent=0 // loop_header_branch
    %13 = sbr.rel (%p11) target = $region8
  $region5: #{fft_loss.1} parent=0 // loop_body
    %s15 = ssub.s32 %s10, 1
    %s16 = ssub.s32 %s10, 2
    %s17 = sadd.s32 %s10, 1
    %s19 = sadd.s32 %s18, 1
    %p22 = scmp.eq.s32.totalorder %s10, 1
    %p23 = scmp.ne.s32.totalorder %s18, %s20
    %p24 = scmp.eq.s32.totalorder %s10, 0
    %p25 = por %p23, %p24
    %p26 = scmp.ne.s32.totalorder %s18, %s20
    %p27 = scmp.eq.s32.totalorder %s15, 1
    %p28 = por %p26, %p27
    %p29 = scmp.ne.s32.totalorder %s20, %s21
    %p30 = scmp.eq.s32.totalorder %s15, 0
    %p31 = por %p29, %p30
    %p32 = scmp.ne.s32.totalorder %s20, %s21
    %p33 = scmp.eq.s32.totalorder %s16, 1
    %p34 = por %p32, %p33
    %p36 = scmp.ne.s32.totalorder %s21, %s35
    %p37 = scmp.eq.s32.totalorder %s16, 0
    %p38 = por %p36, %p37
    %s40 = sadd.s32 %s39, 1
    %p43 = scmp.eq.s32.totalorder %s10, 1
    %p44 = scmp.ne.s32.totalorder %s39, %s41
    %p45 = scmp.eq.s32.totalorder %s10, 0
    %p46 = por %p44, %p45
    %p47 = scmp.ne.s32.totalorder %s39, %s41
    %p48 = scmp.eq.s32.totalorder %s15, 1
    %p49 = por %p47, %p48
    %p50 = scmp.ne.s32.totalorder %s41, %s42
    %p51 = scmp.eq.s32.totalorder %s15, 0
    %p52 = por %p50, %p51
    %p53 = scmp.ne.s32.totalorder %s41, %s42
    %p54 = scmp.eq.s32.totalorder %s16, 1
    %p55 = por %p53, %p54
    %p57 = scmp.ne.s32.totalorder %s42, %s56
    %p58 = scmp.eq.s32.totalorder %s16, 0
    %p59 = por %p57, %p58
    %s61 = sadd.s32 %s60, 1
    %p64 = scmp.eq.s32.totalorder %s10, 1
    %p65 = scmp.ne.s32.totalorder %s60, %s62
    %p66 = scmp.eq.s32.totalorder %s10, 0
    %p67 = por %p65, %p66
    %p68 = scmp.ne.s32.totalorder %s60, %s62
    %p69 = scmp.eq.s32.totalorder %s15, 1
    %p70 = por %p68, %p69
    %p71 = scmp.ne.s32.totalorder %s62, %s63
    %p72 = scmp.eq.s32.totalorder %s15, 0
    %p73 = por %p71, %p72
    %p74 = scmp.ne.s32.totalorder %s62, %s63
    %p75 = scmp.eq.s32.totalorder %s16, 1
    %p76 = por %p74, %p75
    %p78 = scmp.ne.s32.totalorder %s63, %s77
    %p79 = scmp.eq.s32.totalorder %s16, 0
    %p80 = por %p78, %p79
    %s81 = ssub.s32 %s10, %s17
    %p82 = scmp.eq.s32.totalorder %s81, 0
    %s84 = sadd.s32 %s83, 1
    %s85 = scalar_select %p82, %s83, %s84
    %p88 = pneg %p82
    %p89 = scmp.eq.s32.totalorder %s10, 1
    %p90 = por %p88, %p89
    %p91 = scmp.ne.s32.totalorder %s83, %s86
    %p92 = scmp.eq.s32.totalorder %s10, 0
    %p93 = por %p91, %p92
    %p94 = scmp.ne.s32.totalorder %s83, %s86
    %p95 = scmp.eq.s32.totalorder %s15, 1
    %p96 = por %p94, %p95
    %p97 = scmp.ne.s32.totalorder %s86, %s87
    %p98 = scmp.eq.s32.totalorder %s15, 0
    %p99 = por %p97, %p98
    %p100 = scmp.ne.s32.totalorder %s86, %s87
    %p101 = scmp.eq.s32.totalorder %s16, 1
    %p102 = por %p100, %p101
    %p104 = scmp.ne.s32.totalorder %s87, %s103
    %p105 = scmp.eq.s32.totalorder %s16, 0
    %p106 = por %p104, %p105
    %s107 = ssub.s32 %s10, %s17
    %p108 = scmp.eq.s32.totalorder %s107, 0
    %s110 = sadd.s32 %s109, 1
    %s111 = scalar_select %p108, %s109, %s110
    %p114 = pneg %p108
    %p115 = scmp.eq.s32.totalorder %s10, 1
    %p116 = por %p114, %p115
    %p117 = scmp.ne.s32.totalorder %s109, %s112
    %p118 = scmp.eq.s32.totalorder %s10, 0
    %p119 = por %p117, %p118
    %p120 = scmp.ne.s32.totalorder %s109, %s112
    %p121 = scmp.eq.s32.totalorder %s15, 1
    %p122 = por %p120, %p121
    %p123 = scmp.ne.s32.totalorder %s112, %s113
    %p124 = scmp.eq.s32.totalorder %s15, 0
    %p125 = por %p123, %p124
    %p126 = scmp.ne.s32.totalorder %s112, %s113
    %p127 = scmp.eq.s32.totalorder %s16, 1
    %p128 = por %p126, %p127
    %p130 = scmp.ne.s32.totalorder %s113, %s129
    %p131 = scmp.eq.s32.totalorder %s16, 0
    %p132 = por %p130, %p131
    %p133 = scmp.le.s32.totalorder 1, %s10
    %p134 = scmp.lt.s32.totalorder %s10, 3
    %p135 = pnand %p133, %p134
    %p136 = pneg %p135
    // Predicated region
    $region9: #{fft_loss.1} parent=5 // pred_check
      _
    $region10: #{fft_loss.1} parent=5 // pred_check_branch
      %138 = sbr.rel (%p135) target = $region12
    $region11: #{fft_loss.1} parent=5 // pred_region
      %s139 = ssub.s32 %s10, 1
      // Predicated region
      $region13: #{fft_loss.1} parent=11 // pred_check
        %p140 = pneg %p31
      $region14: #{fft_loss.1} parent=11 // pred_check_branch
        %142 = sbr.rel (%p140) target = $region16
      $region15: #{fft_loss.1} parent=11 // pred_region
        _
      $region16: #{fft_loss.1} parent=11 // pred_fallthru
        _
      // Predicated region
      $region17: #{fft_loss.1} parent=11 // pred_check
        %p143 = pneg %p52
      $region18: #{fft_loss.1} parent=11 // pred_check_branch
        %145 = sbr.rel (%p143) target = $region20
      $region19: #{fft_loss.1} parent=11 // pred_region
        _
      $region20: #{fft_loss.1} parent=11 // pred_fallthru
        _
      // Predicated region
      $region21: #{fft_loss.1} parent=11 // pred_check
        %p146 = pneg %p73
      $region22: #{fft_loss.1} parent=11 // pred_check_branch
        %148 = sbr.rel (%p146) target = $region24
      $region23: #{fft_loss.1} parent=11 // pred_region
        _
      $region24: #{fft_loss.1} parent=11 // pred_fallthru
        _
    $region12: #{fft_loss.1} parent=5 // pred_fallthru
      _
    %p149 = scmp.lt.s32.totalorder %s10, 2
    // Predicated region
    $region25: #{fft_loss.1} parent=5 // pred_check
      %p150 = pneg %p149
    $region26: #{fft_loss.1} parent=5 // pred_check_branch
      %152 = sbr.rel (%p150) target = $region28
    $region27: #{fft_loss.1} parent=5 // pred_region
      // Predicated region
      $region29: #{fft_loss.1} parent=27 // pred_check
        %p153 = pneg %p93
      $region30: #{fft_loss.1} parent=27 // pred_check_branch
        %155 = sbr.rel (%p153) target = $region32
      $region31: #{fft_loss.1} parent=27 // pred_region
        %s156 = smul.u32 16, %s10
        %p157 = scmp.lt.s32.totalorder %s156, 31
        %s158 = scalar_select %p157, %s156, 31
        %s159 = smul.addr %s158, 4
        %s160 = scalar_lea.vmem %s3, %s159
        %s161 = smul.u32 16, %s10
      $region32: #{fft_loss.1} parent=27 // pred_fallthru
        _
    $region28: #{fft_loss.1} parent=5 // pred_fallthru
      _
    %p162 = scmp.le.s32.totalorder 1, %s10
    %p163 = scmp.lt.s32.totalorder %s10, 3
    %p164 = pnand %p162, %p163
    %p165 = pneg %p164
    // Predicated region
    $region33: #{fft_loss.1} parent=5 // pred_check
      _
    $region34: #{fft_loss.1} parent=5 // pred_check_branch
      %167 = sbr.rel (%p164) target = $region36
    $region35: #{fft_loss.1} parent=5 // pred_region
      %s168 = ssub.s32 %s10, 1
      %p169 = pneg %p31
      %p170 = pneg %p28
      %p171 = pneg %p52
      %p172 = pneg %p49
      %p173 = pneg %p73
      %p174 = pneg %p70
      %s175 = smul.u32 16, %s15
      %p176 = scmp.lt.s32.totalorder %s175, 31
      %s177 = scalar_select %p176, %s175, 31
      %s178 = smul.addr %s177, 4
      %s179 = scalar_lea.vmem %s3, %s178
      %p180 = pneg %p99
      %p181 = pneg %p96
      %p182 = pneg %p125
      %p183 = pneg %p122
      %p184 = scmp.lt.s32.totalorder %s15, 1
      %s185 = scalar_select %p184, %s15, 1
      %s186 = smul.addr %s185, 2
      %s187 = smul.addr %s186, 8
      %s188 = scalar_lea.vmem %s4, %s187
      %s189 = smul.u32 16, %s15
      %p190 = scmp.lt.s32.totalorder %s189, 31
      %s191 = scalar_select %p190, %s189, 31
      %s192 = smul.addr %s191, 4
      %s193 = scalar_lea.vmem %s3, %s192
      %s194 = smul.u32 16, %s15
      %p195 = scmp.lt.s32.totalorder %s15, 1
      %s196 = scalar_select %p195, %s15, 1
      %s197 = smul.addr %s196, 2
      %s198 = smul.addr %s197, 8
      %s199 = scalar_lea.vmem %s4, %s198
      %v201 = vld [vmem:[%s193] sm:$0xf]
      %v202 = vld [vmem:[%s193 + $0x4] sm:$0xf]
      %v203 = vld [vmem:[%s193 + $0x8] sm:$0xf]
      %v204 = vld [vmem:[%s193 + $0xc] sm:$0xf]
      %v205 = vld [vmem:[%s193 + $0x10] sm:$0xf]
      %v206 = vld [vmem:[%s193 + $0x14] sm:$0xf]
      %v207 = vld [vmem:[%s193 + $0x18] sm:$0xf]
      %v208 = vld [vmem:[%s193 + $0x1c] sm:$0xf]
      %v209 = vld [vmem:[%s193 + $0x20] sm:$0xf]
      %v210 = vld [vmem:[%s193 + $0x24] sm:$0xf]
      %v211 = vld [vmem:[%s193 + $0x28] sm:$0xf]
      %v212 = vld [vmem:[%s193 + $0x2c] sm:$0xf]
      %v213 = vld [vmem:[%s193 + $0x30] sm:$0xf]
      %v214 = vld [vmem:[%s193 + $0x34] sm:$0xf]
      %v215 = vld [vmem:[%s193 + $0x38] sm:$0xf]
      %v216 = vld [vmem:[%s193 + $0x3c] sm:$0xf]
      %v217 = vld [vmem:[%s0] sm:$0xff]
      %v218 = vld [vmem:[%s0 + $0x8] sm:$0xff]
      %v235 = vunpack.c.l.b16 %v201
      %v236 = vunpack.c.l.b16 %v202
      %v237 = vunpack.c.l.b16 %v203
      %v238 = vunpack.c.l.b16 %v204
      %v239 = vunpack.c.l.b16 %v205
      %v240 = vunpack.c.l.b16 %v206
      %v241 = vunpack.c.l.b16 %v207
      %v242 = vunpack.c.l.b16 %v208
      %v243 = vunpack.c.l.b16 %v209
      %v244 = vunpack.c.l.b16 %v210
      %v245 = vunpack.c.l.b16 %v211
      %v246 = vunpack.c.l.b16 %v212
      %v247 = vunpack.c.l.b16 %v213
      %v248 = vunpack.c.l.b16 %v214
      %v249 = vunpack.c.l.b16 %v215
      %v250 = vunpack.c.l.b16 %v216
      %v251 = vpack.c.b16 %v236, %v235
      %v252 = vpack.c.b16 %v238, %v237
      %v253 = vpack.c.b16 %v240, %v239
      %v254 = vpack.c.b16 %v242, %v241
      %v255 = vpack.c.b16 %v244, %v243
      %v256 = vpack.c.b16 %v246, %v245
      %v257 = vpack.c.b16 %v248, %v247
      %v258 = vpack.c.b16 %v250, %v249
      %v261 = vunpack.c.l.b16 %v217
      %v262 = vunpack.c.h.b16 %v217
      %v263 = vunpack.c.l.b16 %v218
      %v264 = vunpack.c.h.b16 %v218
      %v265 = vpack.c.b16 %v263, %v261
      %v266 = vpack.c.b16 %v264, %v262
      %vm269 = vcmask 130048
      %v271 = vsel %vm269, %v251, 0
      %v274 = vsel %vm269, %v252, 0
      %v277 = vsel %vm269, %v253, 0
      %v280 = vsel %vm269, %v254, 0
      %v283 = vsel %vm269, %v255, 0
      %v286 = vsel %vm269, %v256, 0
      %v289 = vsel %vm269, %v257, 0
      %v292 = vsel %vm269, %v258, 0
      %294 = vmatprep.subr.bf16.mxu0 %v266
      %295 = vmatpush1.bf16.msra.mxu0 %v265
      %296 = vmatprep.subr.bf16.mxu0 0
      %297 = vmatpush1.bf16.msra.mxu0 0
      %298 = vmatprep.subr.bf16.mxu0 0
      %299 = vmatpush1.bf16.msra.mxu0 0
      %300 = vmatprep.subr.bf16.mxu0 0
      %301 = vmatpush1.bf16.msra.mxu0 0
      %302 = vmatprep.subr.bf16.mxu0 0
      %303 = vmatpush1.bf16.msra.mxu0 0
      %304 = vmatprep.subr.bf16.mxu0 0
      %305 = vmatpush1.bf16.msra.mxu0 0
      %306 = vmatprep.subr.bf16.mxu0 0
      %307 = vmatpush1.bf16.msra.mxu0 0
      %308 = vmatprep.subr.bf16.mxu0 0
      %309 = vmatpush1.bf16.msra.mxu0 0
      %310 = vmatprep.subr.bf16.mxu0 0
      %311 = vmatpush1.bf16.msra.mxu0 0
      %312 = vmatprep.subr.bf16.mxu0 0
      %313 = vmatpush1.bf16.msra.mxu0 0
      %314 = vmatprep.subr.bf16.mxu0 0
      %315 = vmatpush1.bf16.msra.mxu0 0
      %316 = vmatprep.subr.bf16.mxu0 0
      %317 = vmatpush1.bf16.msra.mxu0 0
      %318 = vmatprep.subr.bf16.mxu0 0
      %319 = vmatpush1.bf16.msra.mxu0 0
      %320 = vmatprep.subr.bf16.mxu0 0
      %321 = vmatpush1.bf16.msra.mxu0 0
      %322 = vmatprep.subr.bf16.mxu0 0
      %323 = vmatpush1.bf16.msra.mxu0 0
      %324 = vmatprep.subr.bf16.mxu0 0
      %325 = vmatpush1.bf16.msra.mxu0 0
      %326 = vmatprep.mubr.bf16.mxu0 0
      %327 = vmatmul.mubr.bf16.gmra.mrb[0].mxu0 %v271
      %v328 = vpop.f32.mrb[0].mxu0
      %v329 = vadd.f32 0.0, %v328
      %v330 = vpop.f32.mrb[0].mxu0
      %v331 = vadd.f32 0.0, %v330
      %v332 = vpop.f32.mrb[0].mxu0
      %v333 = vadd.f32 0.0, %v332
      %v334 = vpop.f32.mrb[0].mxu0
      %v335 = vadd.f32 0.0, %v334
      %336 = vmatprep.mubr.bf16.mxu0 0
      %337 = vmatmul.mubr.bf16.gmra.mrb[0].mxu0 %v274
      %v338 = vpop.f32.mrb[0].mxu0
      %v339 = vadd.f32 0.0, %v338
      %v340 = vpop.f32.mrb[0].mxu0
      %v341 = vadd.f32 0.0, %v340
      %v342 = vpop.f32.mrb[0].mxu0
      %v343 = vadd.f32 0.0, %v342
      %v344 = vpop.f32.mrb[0].mxu0
      %v345 = vadd.f32 0.0, %v344
      %346 = vmatprep.mubr.bf16.mxu0 0
      %347 = vmatmul.mubr.bf16.gmra.mrb[0].mxu0 %v277
      %v348 = vpop.f32.mrb[0].mxu0
      %v349 = vadd.f32 0.0, %v348
      %v350 = vpop.f32.mrb[0].mxu0
      %v351 = vadd.f32 0.0, %v350
      %v352 = vpop.f32.mrb[0].mxu0
      %v353 = vadd.f32 0.0, %v352
      %v354 = vpop.f32.mrb[0].mxu0
      %v355 = vadd.f32 0.0, %v354
      %356 = vmatprep.mubr.bf16.mxu0 0
      %357 = vmatmul.mubr.bf16.gmra.mrb[0].mxu0 %v280
      %v358 = vpop.f32.mrb[0].mxu0
      %v359 = vadd.f32 0.0, %v358
      %v360 = vpop.f32.mrb[0].mxu0
      %v361 = vadd.f32 0.0, %v360
      %v362 = vpop.f32.mrb[0].mxu0
      %v363 = vadd.f32 0.0, %v362
      %v364 = vpop.f32.mrb[0].mxu0
      %v365 = vadd.f32 0.0, %v364
      %366 = vmatprep.mubr.bf16.mxu0 0
      %367 = vmatmul.mubr.bf16.gmra.mrb[0].mxu0 %v283
      %v368 = vpop.f32.mrb[0].mxu0
      %v369 = vadd.f32 0.0, %v368
      %v370 = vpop.f32.mrb[0].mxu0
      %v371 = vadd.f32 0.0, %v370
      %v372 = vpop.f32.mrb[0].mxu0
      %v373 = vadd.f32 0.0, %v372
      %v374 = vpop.f32.mrb[0].mxu0
      %v375 = vadd.f32 0.0, %v374
      %376 = vmatprep.mubr.bf16.mxu0 0
      %377 = vmatmul.mubr.bf16.gmra.mrb[0].mxu0 %v286
      %v378 = vpop.f32.mrb[0].mxu0
      %v379 = vadd.f32 0.0, %v378
      %v380 = vpop.f32.mrb[0].mxu0
      %v381 = vadd.f32 0.0, %v380
      %v382 = vpop.f32.mrb[0].mxu0
      %v383 = vadd.f32 0.0, %v382
      %v384 = vpop.f32.mrb[0].mxu0
      %v385 = vadd.f32 0.0, %v384
      %386 = vmatprep.mubr.bf16.mxu0 0
      %387 = vmatmul.mubr.bf16.gmra.mrb[0].mxu0 %v289
      %v388 = vpop.f32.mrb[0].mxu0
      %v389 = vadd.f32 0.0, %v388
      %v390 = vpop.f32.mrb[0].mxu0
      %v391 = vadd.f32 0.0, %v390
      %v392 = vpop.f32.mrb[0].mxu0
      %v393 = vadd.f32 0.0, %v392
      %v394 = vpop.f32.mrb[0].mxu0
      %v395 = vadd.f32 0.0, %v394
      %396 = vmatprep.mubr.bf16.mxu0 0
      %397 = vmatmul.mubr.bf16.gmra.mrb[0].mxu0 %v292
      %v398 = vpop.f32.mrb[0].mxu0
      %v399 = vadd.f32 0.0, %v398
      %v400 = vpop.f32.mrb[0].mxu0
      %v401 = vadd.f32 0.0, %v400
      %v402 = vpop.f32.mrb[0].mxu0
      %v403 = vadd.f32 0.0, %v402
      %v404 = vpop.f32.mrb[0].mxu0
      %v405 = vadd.f32 0.0, %v404
      %406 = vdwg.mxu0
      %v407 = vpack.c.bf16 %v333, %v329
      %v408 = vpack.c.bf16 %v335, %v331
      %v409 = vpack.c.bf16 %v343, %v339
      %v410 = vpack.c.bf16 %v345, %v341
      %v411 = vpack.c.bf16 %v353, %v349
      %v412 = vpack.c.bf16 %v355, %v351
      %v413 = vpack.c.bf16 %v363, %v359
      %v414 = vpack.c.bf16 %v365, %v361
      %v415 = vpack.c.bf16 %v373, %v369
      %v416 = vpack.c.bf16 %v375, %v371
      %v417 = vpack.c.bf16 %v383, %v379
      %v418 = vpack.c.bf16 %v385, %v381
      %v419 = vpack.c.bf16 %v393, %v389
      %v420 = vpack.c.bf16 %v395, %v391
      %v421 = vpack.c.bf16 %v403, %v399
      %v422 = vpack.c.bf16 %v405, %v401
      %v423 = vld [vmem:[%s1] sm:$0xf]
      %v424 = vld [vmem:[%s1 + $0x4] sm:$0xf]
      %v425 = vld [vmem:[%s1 + $0x8] sm:$0xf]
      %v426 = vld [vmem:[%s1 + $0xc] sm:$0xf]
      %v427 = vld [vmem:[%s1 + $0x10] sm:$0xf]
      %v428 = vld [vmem:[%s1 + $0x14] sm:$0xf]
      %v429 = vld [vmem:[%s1 + $0x18] sm:$0xf]
      %v430 = vld [vmem:[%s1 + $0x1c] sm:$0xf]
      %v431 = vld [vmem:[%s1 + $0x20] sm:$0xf]
      %v432 = vld [vmem:[%s1 + $0x24] sm:$0xf]
      %v433 = vld [vmem:[%s1 + $0x28] sm:$0xf]
      %v434 = vld [vmem:[%s1 + $0x2c] sm:$0xf]
      %v435 = vld [vmem:[%s1 + $0x30] sm:$0xf]
      %v436 = vld [vmem:[%s1 + $0x34] sm:$0xf]
      %v437 = vld [vmem:[%s1 + $0x38] sm:$0xf]
      %v438 = vld [vmem:[%s1 + $0x3c] sm:$0xf]
      %v441 = vunpack.c.l.b16 %v423
      %v442 = vunpack.c.l.b16 %v424
      %v443 = vpack.c.b16 %v442, %v441
      %v445 = vsel %vm269, %v443, 0
      %447 = vmatprep.subr.bf16.mxu0 %v408
      %448 = vmatpush1.bf16.msra.mxu0 %v407
      %449 = vmatprep.subr.bf16.mxu0 0
      %450 = vmatpush1.bf16.msra.mxu0 0
      %451 = vmatprep.subr.bf16.mxu0 0
      %452 = vmatpush1.bf16.msra.mxu0 0
      %453 = vmatprep.subr.bf16.mxu0 0
      %454 = vmatpush1.bf16.msra.mxu0 0
      %455 = vmatprep.subr.bf16.mxu0 0
      %456 = vmatpush1.bf16.msra.mxu0 0
      %457 = vmatprep.subr.bf16.mxu0 0
      %458 = vmatpush1.bf16.msra.mxu0 0
      %459 = vmatprep.subr.bf16.mxu0 0
      %460 = vmatpush1.bf16.msra.mxu0 0
      %461 = vmatprep.subr.bf16.mxu0 0
      %462 = vmatpush1.bf16.msra.mxu0 0
      %463 = vmatprep.subr.bf16.mxu0 0
      %464 = vmatpush1.bf16.msra.mxu0 0
      %465 = vmatprep.subr.bf16.mxu0 0
      %466 = vmatpush1.bf16.msra.mxu0 0
      %467 = vmatprep.subr.bf16.mxu0 0
      %468 = vmatpush1.bf16.msra.mxu0 0
      %469 = vmatprep.subr.bf16.mxu0 0
      %470 = vmatpush1.bf16.msra.mxu0 0
      %471 = vmatprep.subr.bf16.mxu0 0
      %472 = vmatpush1.bf16.msra.mxu0 0
      %473 = vmatprep.subr.bf16.mxu0 0
      %474 = vmatpush1.bf16.msra.mxu0 0
      %475 = vmatprep.subr.bf16.mxu0 0
      %476 = vmatpush1.bf16.msra.mxu0 0
      %477 = vmatprep.subr.bf16.mxu0 0
      %478 = vmatpush1.bf16.msra.mxu0 0
      %479 = vmatprep.mubr.bf16.mxu0 0
      %480 = vmatmul.mubr.bf16.gmra.mrb[0].mxu0 %v445
      %v481 = vpop.f32.mrb[0].mxu0
      %v482 = vadd.f32 0.0, %v481
      %v483 = vpop.f32.mrb[0].mxu0
      %v484 = vadd.f32 0.0, %v483
      %v485 = vpop.f32.mrb[0].mxu0
      %v486 = vadd.f32 0.0, %v485
      %v487 = vpop.f32.mrb[0].mxu0
      %v488 = vadd.f32 0.0, %v487
      %489 = vdwg.mxu0
      %v492 = vunpack.c.l.b16 %v425
      %v493 = vunpack.c.l.b16 %v426
      %v494 = vpack.c.b16 %v493, %v492
      %v496 = vsel %vm269, %v494, 0
      %498 = vmatprep.subr.bf16.mxu0 %v410
      %499 = vmatpush1.bf16.msra.mxu0 %v409
      %500 = vmatprep.subr.bf16.mxu0 0
      %501 = vmatpush1.bf16.msra.mxu0 0
      %502 = vmatprep.subr.bf16.mxu0 0
      %503 = vmatpush1.bf16.msra.mxu0 0
      %504 = vmatprep.subr.bf16.mxu0 0
      %505 = vmatpush1.bf16.msra.mxu0 0
      %506 = vmatprep.subr.bf16.mxu0 0
      %507 = vmatpush1.bf16.msra.mxu0 0
      %508 = vmatprep.subr.bf16.mxu0 0
      %509 = vmatpush1.bf16.msra.mxu0 0
      %510 = vmatprep.subr.bf16.mxu0 0
      %511 = vmatpush1.bf16.msra.mxu0 0
      %512 = vmatprep.subr.bf16.mxu0 0
      %513 = vmatpush1.bf16.msra.mxu0 0
      %514 = vmatprep.subr.bf16.mxu0 0
      %515 = vmatpush1.bf16.msra.mxu0 0
      %516 = vmatprep.subr.bf16.mxu0 0
      %517 = vmatpush1.bf16.msra.mxu0 0
      %518 = vmatprep.subr.bf16.mxu0 0
      %519 = vmatpush1.bf16.msra.mxu0 0
      %520 = vmatprep.subr.bf16.mxu0 0
      %521 = vmatpush1.bf16.msra.mxu0 0
      %522 = vmatprep.subr.bf16.mxu0 0
      %523 = vmatpush1.bf16.msra.mxu0 0
      %524 = vmatprep.subr.bf16.mxu0 0
      %525 = vmatpush1.bf16.msra.mxu0 0
      %526 = vmatprep.subr.bf16.mxu0 0
      %527 = vmatpush1.bf16.msra.mxu0 0
      %528 = vmatprep.subr.bf16.mxu0 0
      %529 = vmatpush1.bf16.msra.mxu0 0
      %530 = vmatprep.mubr.bf16.mxu0 0
      %531 = vmatmul.mubr.bf16.gmra.mrb[0].mxu0 %v496
      %v532 = vpop.f32.mrb[0].mxu0
      %v533 = vadd.f32 0.0, %v532
      %v534 = vpop.f32.mrb[0].mxu0
      %v535 = vadd.f32 0.0, %v534
      %v536 = vpop.f32.mrb[0].mxu0
      %v537 = vadd.f32 0.0, %v536
      %v538 = vpop.f32.mrb[0].mxu0
      %v539 = vadd.f32 0.0, %v538
      %540 = vdwg.mxu0
      %v543 = vunpack.c.l.b16 %v427
      %v544 = vunpack.c.l.b16 %v428
      %v545 = vpack.c.b16 %v544, %v543
      %v547 = vsel %vm269, %v545, 0
      %549 = vmatprep.subr.bf16.mxu0 %v412
      %550 = vmatpush1.bf16.msra.mxu0 %v411
      %551 = vmatprep.subr.bf16.mxu0 0
      %552 = vmatpush1.bf16.msra.mxu0 0
      %553 = vmatprep.subr.bf16.mxu0 0
      %554 = vmatpush1.bf16.msra.mxu0 0
      %555 = vmatprep.subr.bf16.mxu0 0
      %556 = vmatpush1.bf16.msra.mxu0 0
      %557 = vmatprep.subr.bf16.mxu0 0
      %558 = vmatpush1.bf16.msra.mxu0 0
      %559 = vmatprep.subr.bf16.mxu0 0
      %560 = vmatpush1.bf16.msra.mxu0 0
      %561 = vmatprep.subr.bf16.mxu0 0
      %562 = vmatpush1.bf16.msra.mxu0 0
      %563 = vmatprep.subr.bf16.mxu0 0
      %564 = vmatpush1.bf16.msra.mxu0 0
      %565 = vmatprep.subr.bf16.mxu0 0
      %566 = vmatpush1.bf16.msra.mxu0 0
      %567 = vmatprep.subr.bf16.mxu0 0
      %568 = vmatpush1.bf16.msra.mxu0 0
      %569 = vmatprep.subr.bf16.mxu0 0
      %570 = vmatpush1.bf16.msra.mxu0 0
      %571 = vmatprep.subr.bf16.mxu0 0
      %572 = vmatpush1.bf16.msra.mxu0 0
      %573 = vmatprep.subr.bf16.mxu0 0
      %574 = vmatpush1.bf16.msra.mxu0 0
      %575 = vmatprep.subr.bf16.mxu0 0
      %576 = vmatpush1.bf16.msra.mxu0 0
      %577 = vmatprep.subr.bf16.mxu0 0
      %578 = vmatpush1.bf16.msra.mxu0 0
      %579 = vmatprep.subr.bf16.mxu0 0
      %580 = vmatpush1.bf16.msra.mxu0 0
      %581 = vmatprep.mubr.bf16.mxu0 0
      %582 = vmatmul.mubr.bf16.gmra.mrb[0].mxu0 %v547
      %v583 = vpop.f32.mrb[0].mxu0
      %v584 = vadd.f32 0.0, %v583
      %v585 = vpop.f32.mrb[0].mxu0
      %v586 = vadd.f32 0.0, %v585
      %v587 = vpop.f32.mrb[0].mxu0
      %v588 = vadd.f32 0.0, %v587
      %v589 = vpop.f32.mrb[0].mxu0
      %v590 = vadd.f32 0.0, %v589
      %591 = vdwg.mxu0
      %v594 = vunpack.c.l.b16 %v429
      %v595 = vunpack.c.l.b16 %v430
      %v596 = vpack.c.b16 %v595, %v594
      %v598 = vsel %vm269, %v596, 0
      %600 = vmatprep.subr.bf16.mxu0 %v414
      %601 = vmatpush1.bf16.msra.mxu0 %v413
      %602 = vmatprep.subr.bf16.mxu0 0
      %603 = vmatpush1.bf16.msra.mxu0 0
      %604 = vmatprep.subr.bf16.mxu0 0
      %605 = vmatpush1.bf16.msra.mxu0 0
      %606 = vmatprep.subr.bf16.mxu0 0
      %607 = vmatpush1.bf16.msra.mxu0 0
      %608 = vmatprep.subr.bf16.mxu0 0
      %609 = vmatpush1.bf16.msra.mxu0 0
      %610 = vmatprep.subr.bf16.mxu0 0
      %611 = vmatpush1.bf16.msra.mxu0 0
      %612 = vmatprep.subr.bf16.mxu0 0
      %613 = vmatpush1.bf16.msra.mxu0 0
      %614 = vmatprep.subr.bf16.mxu0 0
      %615 = vmatpush1.bf16.msra.mxu0 0
      %616 = vmatprep.subr.bf16.mxu0 0
      %617 = vmatpush1.bf16.msra.mxu0 0
      %618 = vmatprep.subr.bf16.mxu0 0
      %619 = vmatpush1.bf16.msra.mxu0 0
      %620 = vmatprep.subr.bf16.mxu0 0
      %621 = vmatpush1.bf16.msra.mxu0 0
      %622 = vmatprep.subr.bf16.mxu0 0
      %623 = vmatpush1.bf16.msra.mxu0 0
      %624 = vmatprep.subr.bf16.mxu0 0
      %625 = vmatpush1.bf16.msra.mxu0 0
      %626 = vmatprep.subr.bf16.mxu0 0
      %627 = vmatpush1.bf16.msra.mxu0 0
      %628 = vmatprep.subr.bf16.mxu0 0
      %629 = vmatpush1.bf16.msra.mxu0 0
      %630 = vmatprep.subr.bf16.mxu0 0
      %631 = vmatpush1.bf16.msra.mxu0 0
      %632 = vmatprep.mubr.bf16.mxu0 0
      %633 = vmatmul.mubr.bf16.gmra.mrb[0].mxu0 %v598
      %v634 = vpop.f32.mrb[0].mxu0
      %v635 = vadd.f32 0.0, %v634
      %v636 = vpop.f32.mrb[0].mxu0
      %v637 = vadd.f32 0.0, %v636
      %v638 = vpop.f32.mrb[0].mxu0
      %v639 = vadd.f32 0.0, %v638
      %v640 = vpop.f32.mrb[0].mxu0
      %v641 = vadd.f32 0.0, %v640
      %642 = vdwg.mxu0
      %v645 = vunpack.c.l.b16 %v431
      %v646 = vunpack.c.l.b16 %v432
      %v647 = vpack.c.b16 %v646, %v645
      %v649 = vsel %vm269, %v647, 0
      %651 = vmatprep.subr.bf16.mxu0 %v416
      %652 = vmatpush1.bf16.msra.mxu0 %v415
      %653 = vmatprep.subr.bf16.mxu0 0
      %654 = vmatpush1.bf16.msra.mxu0 0
      %655 = vmatprep.subr.bf16.mxu0 0
      %656 = vmatpush1.bf16.msra.mxu0 0
      %657 = vmatprep.subr.bf16.mxu0 0
      %658 = vmatpush1.bf16.msra.mxu0 0
      %659 = vmatprep.subr.bf16.mxu0 0
      %660 = vmatpush1.bf16.msra.mxu0 0
      %661 = vmatprep.subr.bf16.mxu0 0
      %662 = vmatpush1.bf16.msra.mxu0 0
      %663 = vmatprep.subr.bf16.mxu0 0
      %664 = vmatpush1.bf16.msra.mxu0 0
      %665 = vmatprep.subr.bf16.mxu0 0
      %666 = vmatpush1.bf16.msra.mxu0 0
      %667 = vmatprep.subr.bf16.mxu0 0
      %668 = vmatpush1.bf16.msra.mxu0 0
      %669 = vmatprep.subr.bf16.mxu0 0
      %670 = vmatpush1.bf16.msra.mxu0 0
      %671 = vmatprep.subr.bf16.mxu0 0
      %672 = vmatpush1.bf16.msra.mxu0 0
      %673 = vmatprep.subr.bf16.mxu0 0
      %674 = vmatpush1.bf16.msra.mxu0 0
      %675 = vmatprep.subr.bf16.mxu0 0
      %676 = vmatpush1.bf16.msra.mxu0 0
      %677 = vmatprep.subr.bf16.mxu0 0
      %678 = vmatpush1.bf16.msra.mxu0 0
      %679 = vmatprep.subr.bf16.mxu0 0
      %680 = vmatpush1.bf16.msra.mxu0 0
      %681 = vmatprep.subr.bf16.mxu0 0
      %682 = vmatpush1.bf16.msra.mxu0 0
      %683 = vmatprep.mubr.bf16.mxu0 0
      %684 = vmatmul.mubr.bf16.gmra.mrb[0].mxu0 %v649
      %v685 = vpop.f32.mrb[0].mxu0
      %v686 = vadd.f32 0.0, %v685
      %v687 = vpop.f32.mrb[0].mxu0
      %v688 = vadd.f32 0.0, %v687
      %v689 = vpop.f32.mrb[0].mxu0
      %v690 = vadd.f32 0.0, %v689
      %v691 = vpop.f32.mrb[0].mxu0
      %v692 = vadd.f32 0.0, %v691
      %693 = vdwg.mxu0
      %v696 = vunpack.c.l.b16 %v433
      %v697 = vunpack.c.l.b16 %v434
      %v698 = vpack.c.b16 %v697, %v696
      %v700 = vsel %vm269, %v698, 0
      %702 = vmatprep.subr.bf16.mxu0 %v418
      %703 = vmatpush1.bf16.msra.mxu0 %v417
      %704 = vmatprep.subr.bf16.mxu0 0
      %705 = vmatpush1.bf16.msra.mxu0 0
      %706 = vmatprep.subr.bf16.mxu0 0
      %707 = vmatpush1.bf16.msra.mxu0 0
      %708 = vmatprep.subr.bf16.mxu0 0
      %709 = vmatpush1.bf16.msra.mxu0 0
      %710 = vmatprep.subr.bf16.mxu0 0
      %711 = vmatpush1.bf16.msra.mxu0 0
      %712 = vmatprep.subr.bf16.mxu0 0
      %713 = vmatpush1.bf16.msra.mxu0 0
      %714 = vmatprep.subr.bf16.mxu0 0
      %715 = vmatpush1.bf16.msra.mxu0 0
      %716 = vmatprep.subr.bf16.mxu0 0
      %717 = vmatpush1.bf16.msra.mxu0 0
      %718 = vmatprep.subr.bf16.mxu0 0
      %719 = vmatpush1.bf16.msra.mxu0 0
      %720 = vmatprep.subr.bf16.mxu0 0
      %721 = vmatpush1.bf16.msra.mxu0 0
      %722 = vmatprep.subr.bf16.mxu0 0
      %723 = vmatpush1.bf16.msra.mxu0 0
      %724 = vmatprep.subr.bf16.mxu0 0
      %725 = vmatpush1.bf16.msra.mxu0 0
      %726 = vmatprep.subr.bf16.mxu0 0
      %727 = vmatpush1.bf16.msra.mxu0 0
      %728 = vmatprep.subr.bf16.mxu0 0
      %729 = vmatpush1.bf16.msra.mxu0 0
      %730 = vmatprep.subr.bf16.mxu0 0
      %731 = vmatpush1.bf16.msra.mxu0 0
      %732 = vmatprep.subr.bf16.mxu0 0
      %733 = vmatpush1.bf16.msra.mxu0 0
      %734 = vmatprep.mubr.bf16.mxu0 0
      %735 = vmatmul.mubr.bf16.gmra.mrb[0].mxu0 %v700
      %v736 = vpop.f32.mrb[0].mxu0
      %v737 = vadd.f32 0.0, %v736
      %v738 = vpop.f32.mrb[0].mxu0
      %v739 = vadd.f32 0.0, %v738
      %v740 = vpop.f32.mrb[0].mxu0
      %v741 = vadd.f32 0.0, %v740
      %v742 = vpop.f32.mrb[0].mxu0
      %v743 = vadd.f32 0.0, %v742
      %744 = vdwg.mxu0
      %v747 = vunpack.c.l.b16 %v435
      %v748 = vunpack.c.l.b16 %v436
      %v749 = vpack.c.b16 %v748, %v747
      %v751 = vsel %vm269, %v749, 0
      %753 = vmatprep.subr.bf16.mxu0 %v420
      %754 = vmatpush1.bf16.msra.mxu0 %v419
      %755 = vmatprep.subr.bf16.mxu0 0
      %756 = vmatpush1.bf16.msra.mxu0 0
      %757 = vmatprep.subr.bf16.mxu0 0
      %758 = vmatpush1.bf16.msra.mxu0 0
      %759 = vmatprep.subr.bf16.mxu0 0
      %760 = vmatpush1.bf16.msra.mxu0 0
      %761 = vmatprep.subr.bf16.mxu0 0
      %762 = vmatpush1.bf16.msra.mxu0 0
      %763 = vmatprep.subr.bf16.mxu0 0
      %764 = vmatpush1.bf16.msra.mxu0 0
      %765 = vmatprep.subr.bf16.mxu0 0
      %766 = vmatpush1.bf16.msra.mxu0 0
      %767 = vmatprep.subr.bf16.mxu0 0
      %768 = vmatpush1.bf16.msra.mxu0 0
      %769 = vmatprep.subr.bf16.mxu0 0
      %770 = vmatpush1.bf16.msra.mxu0 0
      %771 = vmatprep.subr.bf16.mxu0 0
      %772 = vmatpush1.bf16.msra.mxu0 0
      %773 = vmatprep.subr.bf16.mxu0 0
      %774 = vmatpush1.bf16.msra.mxu0 0
      %775 = vmatprep.subr.bf16.mxu0 0
      %776 = vmatpush1.bf16.msra.mxu0 0
      %777 = vmatprep.subr.bf16.mxu0 0
      %778 = vmatpush1.bf16.msra.mxu0 0
      %779 = vmatprep.subr.bf16.mxu0 0
      %780 = vmatpush1.bf16.msra.mxu0 0
      %781 = vmatprep.subr.bf16.mxu0 0
      %782 = vmatpush1.bf16.msra.mxu0 0
      %783 = vmatprep.subr.bf16.mxu0 0
      %784 = vmatpush1.bf16.msra.mxu0 0
      %785 = vmatprep.mubr.bf16.mxu0 0
      %786 = vmatmul.mubr.bf16.gmra.mrb[0].mxu0 %v751
      %v787 = vpop.f32.mrb[0].mxu0
      %v788 = vadd.f32 0.0, %v787
      %v789 = vpop.f32.mrb[0].mxu0
      %v790 = vadd.f32 0.0, %v789
      %v791 = vpop.f32.mrb[0].mxu0
      %v792 = vadd.f32 0.0, %v791
      %v793 = vpop.f32.mrb[0].mxu0
      %v794 = vadd.f32 0.0, %v793
      %795 = vdwg.mxu0
      %v798 = vunpack.c.l.b16 %v437
      %v799 = vunpack.c.l.b16 %v438
      %v800 = vpack.c.b16 %v799, %v798
      %v802 = vsel %vm269, %v800, 0
      %804 = vmatprep.subr.bf16.mxu0 %v422
      %805 = vmatpush1.bf16.msra.mxu0 %v421
      %806 = vmatprep.subr.bf16.mxu0 0
      %807 = vmatpush1.bf16.msra.mxu0 0
      %808 = vmatprep.subr.bf16.mxu0 0
      %809 = vmatpush1.bf16.msra.mxu0 0
      %810 = vmatprep.subr.bf16.mxu0 0
      %811 = vmatpush1.bf16.msra.mxu0 0
      %812 = vmatprep.subr.bf16.mxu0 0
      %813 = vmatpush1.bf16.msra.mxu0 0
      %814 = vmatprep.subr.bf16.mxu0 0
      %815 = vmatpush1.bf16.msra.mxu0 0
      %816 = vmatprep.subr.bf16.mxu0 0
      %817 = vmatpush1.bf16.msra.mxu0 0
      %818 = vmatprep.subr.bf16.mxu0 0
      %819 = vmatpush1.bf16.msra.mxu0 0
      %820 = vmatprep.subr.bf16.mxu0 0
      %821 = vmatpush1.bf16.msra.mxu0 0
      %822 = vmatprep.subr.bf16.mxu0 0
      %823 = vmatpush1.bf16.msra.mxu0 0
      %824 = vmatprep.subr.bf16.mxu0 0
      %825 = vmatpush1.bf16.msra.mxu0 0
      %826 = vmatprep.subr.bf16.mxu0 0
      %827 = vmatpush1.bf16.msra.mxu0 0
      %828 = vmatprep.subr.bf16.mxu0 0
      %829 = vmatpush1.bf16.msra.mxu0 0
      %830 = vmatprep.subr.bf16.mxu0 0
      %831 = vmatpush1.bf16.msra.mxu0 0
      %832 = vmatprep.subr.bf16.mxu0 0
      %833 = vmatpush1.bf16.msra.mxu0 0
      %834 = vmatprep.subr.bf16.mxu0 0
      %835 = vmatpush1.bf16.msra.mxu0 0
      %836 = vmatprep.mubr.bf16.mxu0 0
      %837 = vmatmul.mubr.bf16.gmra.mrb[0].mxu0 %v802
      %v838 = vpop.f32.mrb[0].mxu0
      %v839 = vadd.f32 0.0, %v838
      %v840 = vpop.f32.mrb[0].mxu0
      %v841 = vadd.f32 0.0, %v840
      %v842 = vpop.f32.mrb[0].mxu0
      %v843 = vadd.f32 0.0, %v842
      %v844 = vpop.f32.mrb[0].mxu0
      %v845 = vadd.f32 0.0, %v844
      %846 = vdwg.mxu0
      %v847 = vld [vmem:[%s2] sm:$0xf]
      %v848 = vld [vmem:[%s2 + $0x4] sm:$0xf]
      %v849 = vld [vmem:[%s2 + $0x8] sm:$0xf]
      %v850 = vld [vmem:[%s2 + $0xc] sm:$0xf]
      %v851 = vld [vmem:[%s2 + $0x10] sm:$0xf]
      %v852 = vld [vmem:[%s2 + $0x14] sm:$0xf]
      %v853 = vld [vmem:[%s2 + $0x18] sm:$0xf]
      %v854 = vld [vmem:[%s2 + $0x1c] sm:$0xf]
      %v855 = vld [vmem:[%s2 + $0x20] sm:$0xf]
      %v856 = vld [vmem:[%s2 + $0x24] sm:$0xf]
      %v857 = vld [vmem:[%s2 + $0x28] sm:$0xf]
      %v858 = vld [vmem:[%s2 + $0x2c] sm:$0xf]
      %v859 = vld [vmem:[%s2 + $0x30] sm:$0xf]
      %v860 = vld [vmem:[%s2 + $0x34] sm:$0xf]
      %v861 = vld [vmem:[%s2 + $0x38] sm:$0xf]
      %v862 = vld [vmem:[%s2 + $0x3c] sm:$0xf]
      %v865 = vunpack.c.l.b16 %v847
      %v866 = vunpack.c.l.b16 %v848
      %v867 = vpack.c.b16 %v866, %v865
      %v869 = vsel %vm269, %v867, 0
      %871 = vmatprep.subr.bf16.mxu0 %v408
      %872 = vmatpush1.bf16.msra.mxu0 %v407
      %873 = vmatprep.subr.bf16.mxu0 0
      %874 = vmatpush1.bf16.msra.mxu0 0
      %875 = vmatprep.subr.bf16.mxu0 0
      %876 = vmatpush1.bf16.msra.mxu0 0
      %877 = vmatprep.subr.bf16.mxu0 0
      %878 = vmatpush1.bf16.msra.mxu0 0
      %879 = vmatprep.subr.bf16.mxu0 0
      %880 = vmatpush1.bf16.msra.mxu0 0
      %881 = vmatprep.subr.bf16.mxu0 0
      %882 = vmatpush1.bf16.msra.mxu0 0
      %883 = vmatprep.subr.bf16.mxu0 0
      %884 = vmatpush1.bf16.msra.mxu0 0
      %885 = vmatprep.subr.bf16.mxu0 0
      %886 = vmatpush1.bf16.msra.mxu0 0
      %887 = vmatprep.subr.bf16.mxu0 0
      %888 = vmatpush1.bf16.msra.mxu0 0
      %889 = vmatprep.subr.bf16.mxu0 0
      %890 = vmatpush1.bf16.msra.mxu0 0
      %891 = vmatprep.subr.bf16.mxu0 0
      %892 = vmatpush1.bf16.msra.mxu0 0
      %893 = vmatprep.subr.bf16.mxu0 0
      %894 = vmatpush1.bf16.msra.mxu0 0
      %895 = vmatprep.subr.bf16.mxu0 0
      %896 = vmatpush1.bf16.msra.mxu0 0
      %897 = vmatprep.subr.bf16.mxu0 0
      %898 = vmatpush1.bf16.msra.mxu0 0
      %899 = vmatprep.subr.bf16.mxu0 0
      %900 = vmatpush1.bf16.msra.mxu0 0
      %901 = vmatprep.subr.bf16.mxu0 0
      %902 = vmatpush1.bf16.msra.mxu0 0
      %903 = vmatprep.mubr.bf16.mxu0 0
      %904 = vmatmul.mubr.bf16.gmra.mrb[0].mxu0 %v869
      %v905 = vpop.f32.mrb[0].mxu0
      %v906 = vadd.f32 0.0, %v905
      %v907 = vpop.f32.mrb[0].mxu0
      %v908 = vadd.f32 0.0, %v907
      %v909 = vpop.f32.mrb[0].mxu0
      %v910 = vadd.f32 0.0, %v909
      %v911 = vpop.f32.mrb[0].mxu0
      %v912 = vadd.f32 0.0, %v911
      %913 = vdwg.mxu0
      %v916 = vunpack.c.l.b16 %v849
      %v917 = vunpack.c.l.b16 %v850
      %v918 = vpack.c.b16 %v917, %v916
      %v920 = vsel %vm269, %v918, 0
      %922 = vmatprep.subr.bf16.mxu0 %v410
      %923 = vmatpush1.bf16.msra.mxu0 %v409
      %924 = vmatprep.subr.bf16.mxu0 0
      %925 = vmatpush1.bf16.msra.mxu0 0
      %926 = vmatprep.subr.bf16.mxu0 0
      %927 = vmatpush1.bf16.msra.mxu0 0
      %928 = vmatprep.subr.bf16.mxu0 0
      %929 = vmatpush1.bf16.msra.mxu0 0
      %930 = vmatprep.subr.bf16.mxu0 0
      %931 = vmatpush1.bf16.msra.mxu0 0
      %932 = vmatprep.subr.bf16.mxu0 0
      %933 = vmatpush1.bf16.msra.mxu0 0
      %934 = vmatprep.subr.bf16.mxu0 0
      %935 = vmatpush1.bf16.msra.mxu0 0
      %936 = vmatprep.subr.bf16.mxu0 0
      %937 = vmatpush1.bf16.msra.mxu0 0
      %938 = vmatprep.subr.bf16.mxu0 0
      %939 = vmatpush1.bf16.msra.mxu0 0
      %940 = vmatprep.subr.bf16.mxu0 0
      %941 = vmatpush1.bf16.msra.mxu0 0
      %942 = vmatprep.subr.bf16.mxu0 0
      %943 = vmatpush1.bf16.msra.mxu0 0
      %944 = vmatprep.subr.bf16.mxu0 0
      %945 = vmatpush1.bf16.msra.mxu0 0
      %946 = vmatprep.subr.bf16.mxu0 0
      %947 = vmatpush1.bf16.msra.mxu0 0
      %948 = vmatprep.subr.bf16.mxu0 0
      %949 = vmatpush1.bf16.msra.mxu0 0
      %950 = vmatprep.subr.bf16.mxu0 0
      %951 = vmatpush1.bf16.msra.mxu0 0
      %952 = vmatprep.subr.bf16.mxu0 0
      %953 = vmatpush1.bf16.msra.mxu0 0
      %954 = vmatprep.mubr.bf16.mxu0 0
      %955 = vmatmul.mubr.bf16.gmra.mrb[0].mxu0 %v920
      %v956 = vpop.f32.mrb[0].mxu0
      %v957 = vadd.f32 0.0, %v956
      %v958 = vpop.f32.mrb[0].mxu0
      %v959 = vadd.f32 0.0, %v958
      %v960 = vpop.f32.mrb[0].mxu0
      %v961 = vadd.f32 0.0, %v960
      %v962 = vpop.f32.mrb[0].mxu0
      %v963 = vadd.f32 0.0, %v962
      %964 = vdwg.mxu0
      %v967 = vunpack.c.l.b16 %v851
      %v968 = vunpack.c.l.b16 %v852
      %v969 = vpack.c.b16 %v968, %v967
      %v971 = vsel %vm269, %v969, 0
      %973 = vmatprep.subr.bf16.mxu0 %v412
      %974 = vmatpush1.bf16.msra.mxu0 %v411
      %975 = vmatprep.subr.bf16.mxu0 0
      %976 = vmatpush1.bf16.msra.mxu0 0
      %977 = vmatprep.subr.bf16.mxu0 0
      %978 = vmatpush1.bf16.msra.mxu0 0
      %979 = vmatprep.subr.bf16.mxu0 0
      %980 = vmatpush1.bf16.msra.mxu0 0
      %981 = vmatprep.subr.bf16.mxu0 0
      %982 = vmatpush1.bf16.msra.mxu0 0
      %983 = vmatprep.subr.bf16.mxu0 0
      %984 = vmatpush1.bf16.msra.mxu0 0
      %985 = vmatprep.subr.bf16.mxu0 0
      %986 = vmatpush1.bf16.msra.mxu0 0
      %987 = vmatprep.subr.bf16.mxu0 0
      %988 = vmatpush1.bf16.msra.mxu0 0
      %989 = vmatprep.subr.bf16.mxu0 0
      %990 = vmatpush1.bf16.msra.mxu0 0
      %991 = vmatprep.subr.bf16.mxu0 0
      %992 = vmatpush1.bf16.msra.mxu0 0
      %993 = vmatprep.subr.bf16.mxu0 0
      %994 = vmatpush1.bf16.msra.mxu0 0
      %995 = vmatprep.subr.bf16.mxu0 0
      %996 = vmatpush1.bf16.msra.mxu0 0
      %997 = vmatprep.subr.bf16.mxu0 0
      %998 = vmatpush1.bf16.msra.mxu0 0
      %999 = vmatprep.subr.bf16.mxu0 0
      %1000 = vmatpush1.bf16.msra.mxu0 0
      %1001 = vmatprep.subr.bf16.mxu0 0
      %1002 = vmatpush1.bf16.msra.mxu0 0
      %1003 = vmatprep.subr.bf16.mxu0 0
      %1004 = vmatpush1.bf16.msra.mxu0 0
      %1005 = vmatprep.mubr.bf16.mxu0 0
      %1006 = vmatmul.mubr.bf16.gmra.mrb[0].mxu0 %v971
      %v1007 = vpop.f32.mrb[0].mxu0
      %v1008 = vadd.f32 0.0, %v1007
      %v1009 = vpop.f32.mrb[0].mxu0
      %v1010 = vadd.f32 0.0, %v1009
      %v1011 = vpop.f32.mrb[0].mxu0
      %v1012 = vadd.f32 0.0, %v1011
      %v1013 = vpop.f32.mrb[0].mxu0
      %v1014 = vadd.f32 0.0, %v1013
      %1015 = vdwg.mxu0
      %v1018 = vunpack.c.l.b16 %v853
      %v1019 = vunpack.c.l.b16 %v854
      %v1020 = vpack.c.b16 %v1019, %v1018
      %v1022 = vsel %vm269, %v1020, 0
      %1024 = vmatprep.subr.bf16.mxu0 %v414
      %1025 = vmatpush1.bf16.msra.mxu0 %v413
      %1026 = vmatprep.subr.bf16.mxu0 0
      %1027 = vmatpush1.bf16.msra.mxu0 0
      %1028 = vmatprep.subr.bf16.mxu0 0
      %1029 = vmatpush1.bf16.msra.mxu0 0
      %1030 = vmatprep.subr.bf16.mxu0 0
      %1031 = vmatpush1.bf16.msra.mxu0 0
      %1032 = vmatprep.subr.bf16.mxu0 0
      %1033 = vmatpush1.bf16.msra.mxu0 0
      %1034 = vmatprep.subr.bf16.mxu0 0
      %1035 = vmatpush1.bf16.msra.mxu0 0
      %1036 = vmatprep.subr.bf16.mxu0 0
      %1037 = vmatpush1.bf16.msra.mxu0 0
      %1038 = vmatprep.subr.bf16.mxu0 0
      %1039 = vmatpush1.bf16.msra.mxu0 0
      %1040 = vmatprep.subr.bf16.mxu0 0
      %1041 = vmatpush1.bf16.msra.mxu0 0
      %1042 = vmatprep.subr.bf16.mxu0 0
      %1043 = vmatpush1.bf16.msra.mxu0 0
      %1044 = vmatprep.subr.bf16.mxu0 0
      %1045 = vmatpush1.bf16.msra.mxu0 0
      %1046 = vmatprep.subr.bf16.mxu0 0
      %1047 = vmatpush1.bf16.msra.mxu0 0
      %1048 = vmatprep.subr.bf16.mxu0 0
      %1049 = vmatpush1.bf16.msra.mxu0 0
      %1050 = vmatprep.subr.bf16.mxu0 0
      %1051 = vmatpush1.bf16.msra.mxu0 0
      %1052 = vmatprep.subr.bf16.mxu0 0
      %1053 = vmatpush1.bf16.msra.mxu0 0
      %1054 = vmatprep.subr.bf16.mxu0 0
      %1055 = vmatpush1.bf16.msra.mxu0 0
      %1056 = vmatprep.mubr.bf16.mxu0 0
      %1057 = vmatmul.mubr.bf16.gmra.mrb[0].mxu0 %v1022
      %v1058 = vpop.f32.mrb[0].mxu0
      %v1059 = vadd.f32 0.0, %v1058
      %v1060 = vpop.f32.mrb[0].mxu0
      %v1061 = vadd.f32 0.0, %v1060
      %v1062 = vpop.f32.mrb[0].mxu0
      %v1063 = vadd.f32 0.0, %v1062
      %v1064 = vpop.f32.mrb[0].mxu0
      %v1065 = vadd.f32 0.0, %v1064
      %1066 = vdwg.mxu0
      %v1069 = vunpack.c.l.b16 %v855
      %v1070 = vunpack.c.l.b16 %v856
      %v1071 = vpack.c.b16 %v1070, %v1069
      %v1073 = vsel %vm269, %v1071, 0
      %1075 = vmatprep.subr.bf16.mxu0 %v416
      %1076 = vmatpush1.bf16.msra.mxu0 %v415
      %1077 = vmatprep.subr.bf16.mxu0 0
      %1078 = vmatpush1.bf16.msra.mxu0 0
      %1079 = vmatprep.subr.bf16.mxu0 0
      %1080 = vmatpush1.bf16.msra.mxu0 0
      %1081 = vmatprep.subr.bf16.mxu0 0
      %1082 = vmatpush1.bf16.msra.mxu0 0
      %1083 = vmatprep.subr.bf16.mxu0 0
      %1084 = vmatpush1.bf16.msra.mxu0 0
      %1085 = vmatprep.subr.bf16.mxu0 0
      %1086 = vmatpush1.bf16.msra.mxu0 0
      %1087 = vmatprep.subr.bf16.mxu0 0
      %1088 = vmatpush1.bf16.msra.mxu0 0
      %1089 = vmatprep.subr.bf16.mxu0 0
      %1090 = vmatpush1.bf16.msra.mxu0 0
      %1091 = vmatprep.subr.bf16.mxu0 0
      %1092 = vmatpush1.bf16.msra.mxu0 0
      %1093 = vmatprep.subr.bf16.mxu0 0
      %1094 = vmatpush1.bf16.msra.mxu0 0
      %1095 = vmatprep.subr.bf16.mxu0 0
      %1096 = vmatpush1.bf16.msra.mxu0 0
      %1097 = vmatprep.subr.bf16.mxu0 0
      %1098 = vmatpush1.bf16.msra.mxu0 0
      %1099 = vmatprep.subr.bf16.mxu0 0
      %1100 = vmatpush1.bf16.msra.mxu0 0
      %1101 = vmatprep.subr.bf16.mxu0 0
      %1102 = vmatpush1.bf16.msra.mxu0 0
      %1103 = vmatprep.subr.bf16.mxu0 0
      %1104 = vmatpush1.bf16.msra.mxu0 0
      %1105 = vmatprep.subr.bf16.mxu0 0
      %1106 = vmatpush1.bf16.msra.mxu0 0
      %1107 = vmatprep.mubr.bf16.mxu0 0
      %1108 = vmatmul.mubr.bf16.gmra.mrb[0].mxu0 %v1073
      %v1109 = vpop.f32.mrb[0].mxu0
      %v1110 = vadd.f32 0.0, %v1109
      %v1111 = vpop.f32.mrb[0].mxu0
      %v1112 = vadd.f32 0.0, %v1111
      %v1113 = vpop.f32.mrb[0].mxu0
      %v1114 = vadd.f32 0.0, %v1113
      %v1115 = vpop.f32.mrb[0].mxu0
      %v1116 = vadd.f32 0.0, %v1115
      %1117 = vdwg.mxu0
      %v1120 = vunpack.c.l.b16 %v857
      %v1121 = vunpack.c.l.b16 %v858
      %v1122 = vpack.c.b16 %v1121, %v1120
      %v1124 = vsel %vm269, %v1122, 0
      %1126 = vmatprep.subr.bf16.mxu0 %v418
      %1127 = vmatpush1.bf16.msra.mxu0 %v417
      %1128 = vmatprep.subr.bf16.mxu0 0
      %1129 = vmatpush1.bf16.msra.mxu0 0
      %1130 = vmatprep.subr.bf16.mxu0 0
      %1131 = vmatpush1.bf16.msra.mxu0 0
      %1132 = vmatprep.subr.bf16.mxu0 0
      %1133 = vmatpush1.bf16.msra.mxu0 0
      %1134 = vmatprep.subr.bf16.mxu0 0
      %1135 = vmatpush1.bf16.msra.mxu0 0
      %1136 = vmatprep.subr.bf16.mxu0 0
      %1137 = vmatpush1.bf16.msra.mxu0 0
      %1138 = vmatprep.subr.bf16.mxu0 0
      %1139 = vmatpush1.bf16.msra.mxu0 0
      %1140 = vmatprep.subr.bf16.mxu0 0
      %1141 = vmatpush1.bf16.msra.mxu0 0
      %1142 = vmatprep.subr.bf16.mxu0 0
      %1143 = vmatpush1.bf16.msra.mxu0 0
      %1144 = vmatprep.subr.bf16.mxu0 0
      %1145 = vmatpush1.bf16.msra.mxu0 0
      %1146 = vmatprep.subr.bf16.mxu0 0
      %1147 = vmatpush1.bf16.msra.mxu0 0
      %1148 = vmatprep.subr.bf16.mxu0 0
      %1149 = vmatpush1.bf16.msra.mxu0 0
      %1150 = vmatprep.subr.bf16.mxu0 0
      %1151 = vmatpush1.bf16.msra.mxu0 0
      %1152 = vmatprep.subr.bf16.mxu0 0
      %1153 = vmatpush1.bf16.msra.mxu0 0
      %1154 = vmatprep.subr.bf16.mxu0 0
      %1155 = vmatpush1.bf16.msra.mxu0 0
      %1156 = vmatprep.subr.bf16.mxu0 0
      %1157 = vmatpush1.bf16.msra.mxu0 0
      %1158 = vmatprep.mubr.bf16.mxu0 0
      %1159 = vmatmul.mubr.bf16.gmra.mrb[0].mxu0 %v1124
      %v1160 = vpop.f32.mrb[0].mxu0
      %v1161 = vadd.f32 0.0, %v1160
      %v1162 = vpop.f32.mrb[0].mxu0
      %v1163 = vadd.f32 0.0, %v1162
      %v1164 = vpop.f32.mrb[0].mxu0
      %v1165 = vadd.f32 0.0, %v1164
      %v1166 = vpop.f32.mrb[0].mxu0
      %v1167 = vadd.f32 0.0, %v1166
      %1168 = vdwg.mxu0
      %v1171 = vunpack.c.l.b16 %v859
      %v1172 = vunpack.c.l.b16 %v860
      %v1173 = vpack.c.b16 %v1172, %v1171
      %v1175 = vsel %vm269, %v1173, 0
      %1177 = vmatprep.subr.bf16.mxu0 %v420
      %1178 = vmatpush1.bf16.msra.mxu0 %v419
      %1179 = vmatprep.subr.bf16.mxu0 0
      %1180 = vmatpush1.bf16.msra.mxu0 0
      %1181 = vmatprep.subr.bf16.mxu0 0
      %1182 = vmatpush1.bf16.msra.mxu0 0
      %1183 = vmatprep.subr.bf16.mxu0 0
      %1184 = vmatpush1.bf16.msra.mxu0 0
      %1185 = vmatprep.subr.bf16.mxu0 0
      %1186 = vmatpush1.bf16.msra.mxu0 0
      %1187 = vmatprep.subr.bf16.mxu0 0
      %1188 = vmatpush1.bf16.msra.mxu0 0
      %1189 = vmatprep.subr.bf16.mxu0 0
      %1190 = vmatpush1.bf16.msra.mxu0 0
      %1191 = vmatprep.subr.bf16.mxu0 0
      %1192 = vmatpush1.bf16.msra.mxu0 0
      %1193 = vmatprep.subr.bf16.mxu0 0
      %1194 = vmatpush1.bf16.msra.mxu0 0
      %1195 = vmatprep.subr.bf16.mxu0 0
      %1196 = vmatpush1.bf16.msra.mxu0 0
      %1197 = vmatprep.subr.bf16.mxu0 0
      %1198 = vmatpush1.bf16.msra.mxu0 0
      %1199 = vmatprep.subr.bf16.mxu0 0
      %1200 = vmatpush1.bf16.msra.mxu0 0
      %1201 = vmatprep.subr.bf16.mxu0 0
      %1202 = vmatpush1.bf16.msra.mxu0 0
      %1203 = vmatprep.subr.bf16.mxu0 0
      %1204 = vmatpush1.bf16.msra.mxu0 0
      %1205 = vmatprep.subr.bf16.mxu0 0
      %1206 = vmatpush1.bf16.msra.mxu0 0
      %1207 = vmatprep.subr.bf16.mxu0 0
      %1208 = vmatpush1.bf16.msra.mxu0 0
      %1209 = vmatprep.mubr.bf16.mxu0 0
      %1210 = vmatmul.mubr.bf16.gmra.mrb[0].mxu0 %v1175
      %v1211 = vpop.f32.mrb[0].mxu0
      %v1212 = vadd.f32 0.0, %v1211
      %v1213 = vpop.f32.mrb[0].mxu0
      %v1214 = vadd.f32 0.0, %v1213
      %v1215 = vpop.f32.mrb[0].mxu0
      %v1216 = vadd.f32 0.0, %v1215
      %v1217 = vpop.f32.mrb[0].mxu0
      %v1218 = vadd.f32 0.0, %v1217
      %1219 = vdwg.mxu0
      %v1222 = vunpack.c.l.b16 %v861
      %v1223 = vunpack.c.l.b16 %v862
      %v1224 = vpack.c.b16 %v1223, %v1222
      %v1226 = vsel %vm269, %v1224, 0
      %1228 = vmatprep.subr.bf16.mxu0 %v422
      %1229 = vmatpush1.bf16.msra.mxu0 %v421
      %1230 = vmatprep.subr.bf16.mxu0 0
      %1231 = vmatpush1.bf16.msra.mxu0 0
      %1232 = vmatprep.subr.bf16.mxu0 0
      %1233 = vmatpush1.bf16.msra.mxu0 0
      %1234 = vmatprep.subr.bf16.mxu0 0
      %1235 = vmatpush1.bf16.msra.mxu0 0
      %1236 = vmatprep.subr.bf16.mxu0 0
      %1237 = vmatpush1.bf16.msra.mxu0 0
      %1238 = vmatprep.subr.bf16.mxu0 0
      %1239 = vmatpush1.bf16.msra.mxu0 0
      %1240 = vmatprep.subr.bf16.mxu0 0
      %1241 = vmatpush1.bf16.msra.mxu0 0
      %1242 = vmatprep.subr.bf16.mxu0 0
      %1243 = vmatpush1.bf16.msra.mxu0 0
      %1244 = vmatprep.subr.bf16.mxu0 0
      %1245 = vmatpush1.bf16.msra.mxu0 0
      %1246 = vmatprep.subr.bf16.mxu0 0
      %1247 = vmatpush1.bf16.msra.mxu0 0
      %1248 = vmatprep.subr.bf16.mxu0 0
      %1249 = vmatpush1.bf16.msra.mxu0 0
      %1250 = vmatprep.subr.bf16.mxu0 0
      %1251 = vmatpush1.bf16.msra.mxu0 0
      %1252 = vmatprep.subr.bf16.mxu0 0
      %1253 = vmatpush1.bf16.msra.mxu0 0
      %1254 = vmatprep.subr.bf16.mxu0 0
      %1255 = vmatpush1.bf16.msra.mxu0 0
      %1256 = vmatprep.subr.bf16.mxu0 0
      %1257 = vmatpush1.bf16.msra.mxu0 0
      %1258 = vmatprep.subr.bf16.mxu0 0
      %1259 = vmatpush1.bf16.msra.mxu0 0
      %1260 = vmatprep.mubr.bf16.mxu0 0
      %1261 = vmatmul.mubr.bf16.gmra.mrb[0].mxu0 %v1226
      %v1262 = vpop.f32.mrb[0].mxu0
      %v1263 = vadd.f32 0.0, %v1262
      %v1264 = vpop.f32.mrb[0].mxu0
      %v1265 = vadd.f32 0.0, %v1264
      %v1266 = vpop.f32.mrb[0].mxu0
      %v1267 = vadd.f32 0.0, %v1266
      %v1268 = vpop.f32.mrb[0].mxu0
      %v1269 = vadd.f32 0.0, %v1268
      %1270 = vdwg.mxu0
      %v1271 = vadd.f32 %v482, %v908
      %v1272 = vadd.f32 %v486, %v912
      %v1273 = vadd.f32 %v533, %v959
      %v1274 = vadd.f32 %v537, %v963
      %v1275 = vadd.f32 %v584, %v1010
      %v1276 = vadd.f32 %v588, %v1014
      %v1277 = vadd.f32 %v635, %v1061
      %v1278 = vadd.f32 %v639, %v1065
      %v1279 = vadd.f32 %v686, %v1112
      %v1280 = vadd.f32 %v690, %v1116
      %v1281 = vadd.f32 %v737, %v1163
      %v1282 = vadd.f32 %v741, %v1167
      %v1283 = vadd.f32 %v788, %v1214
      %v1284 = vadd.f32 %v792, %v1218
      %v1285 = vadd.f32 %v839, %v1265
      %v1286 = vadd.f32 %v843, %v1269
      %v1287 = vsub.f32 %v484, %v906
      %v1288 = vsub.f32 %v488, %v910
      %v1289 = vsub.f32 %v535, %v957
      %v1290 = vsub.f32 %v539, %v961
      %v1291 = vsub.f32 %v586, %v1008
      %v1292 = vsub.f32 %v590, %v1012
      %v1293 = vsub.f32 %v637, %v1059
      %v1294 = vsub.f32 %v641, %v1063
      %v1295 = vsub.f32 %v688, %v1110
      %v1296 = vsub.f32 %v692, %v1114
      %v1297 = vsub.f32 %v739, %v1161
      %v1298 = vsub.f32 %v743, %v1165
      %v1299 = vsub.f32 %v790, %v1212
      %v1300 = vsub.f32 %v794, %v1216
      %v1301 = vsub.f32 %v841, %v1263
      %v1302 = vsub.f32 %v845, %v1267
      %v1303 = vlaneseq
      %v1304 = vshrl.u32 %v1303, 7
      %v1305 = vadd.s32 %v1304, 8
      %v1306 = vlaneseq
      %v1307 = vand.u32 %v1306, 127
      %vm1308 = vcmp.eq.s32.totalorder %v1304, 0
      %vm1309 = vcmp.eq.s32.totalorder %v1305, 0
      %vm1310 = vcmp.eq.s32.totalorder %v1304, 8
      %vm1311 = vcmp.eq.s32.totalorder %v1305, 8
      %vm1312 = vmor %vm1308, %vm1310
      %vm1313 = vmor %vm1309, %vm1311
      %vm1314 = vcmp.eq.s32.totalorder %v1307, 0
      %vm1315 = vcmp.eq.s32.totalorder %v1307, 8
      %vm1316 = vmor %vm1314, %vm1315
      %vm1317 = vmand %vm1312, %vm1316
      %vm1318 = vmand %vm1313, %vm1316
      %v1319 = vsel %vm1317, 0.0, 1.0
      %v1320 = vsel %vm1318, 0.0, 1.0
      %v1321 = vmul.f32 %v1287, %v1319
      %v1322 = vmul.f32 %v1288, %v1320
      %v1323 = vmul.f32 %v1289, %v1319
      %v1324 = vmul.f32 %v1290, %v1320
      %v1325 = vmul.f32 %v1291, %v1319
      %v1326 = vmul.f32 %v1292, %v1320
      %v1327 = vmul.f32 %v1293, %v1319
      %v1328 = vmul.f32 %v1294, %v1320
      %v1329 = vmul.f32 %v1295, %v1319
      %v1330 = vmul.f32 %v1296, %v1320
      %v1331 = vmul.f32 %v1297, %v1319
      %v1332 = vmul.f32 %v1298, %v1320
      %v1333 = vmul.f32 %v1299, %v1319
      %v1334 = vmul.f32 %v1300, %v1320
      %v1335 = vmul.f32 %v1301, %v1319
      %v1336 = vmul.f32 %v1302, %v1320
      %v1337 = vmul.f32 %v1271, %v1271
      %v1338 = vmul.f32 %v1272, %v1272
      %v1339 = vmul.f32 %v1273, %v1273
      %v1340 = vmul.f32 %v1274, %v1274
      %v1341 = vmul.f32 %v1275, %v1275
      %v1342 = vmul.f32 %v1276, %v1276
      %v1343 = vmul.f32 %v1277, %v1277
      %v1344 = vmul.f32 %v1278, %v1278
      %v1345 = vmul.f32 %v1321, %v1321
      %v1346 = vmul.f32 %v1322, %v1322
      %v1347 = vmul.f32 %v1323, %v1323
      %v1348 = vmul.f32 %v1324, %v1324
      %v1349 = vmul.f32 %v1325, %v1325
      %v1350 = vmul.f32 %v1326, %v1326
      %v1351 = vmul.f32 %v1327, %v1327
      %v1352 = vmul.f32 %v1328, %v1328
      %v1353 = vadd.f32 %v1337, %v1345
      %v1354 = vadd.f32 %v1338, %v1346
      %v1355 = vadd.f32 %v1339, %v1347
      %v1356 = vadd.f32 %v1340, %v1348
      %v1357 = vadd.f32 %v1341, %v1349
      %v1358 = vadd.f32 %v1342, %v1350
      %v1359 = vadd.f32 %v1343, %v1351
      %v1360 = vadd.f32 %v1344, %v1352
      %v1361 = vrsqrt.pop %v1353
      %v1362 = vmul.f32 %v1353, %v1361
      %vm1363 = vcmp.eq.f32.partialorder %v1353, inf
      %v1364 = vsel %vm1363, %v1353, %v1362
      %vm1365 = vcmp.eq.f32.partialorder %v1353, 0.0
      %v1366 = vand.u32 %v1353, 2147483648
      %v1367 = vsel %vm1365, %v1366, %v1364
      %v1368 = vrsqrt.pop %v1354
      %v1369 = vmul.f32 %v1354, %v1368
      %vm1370 = vcmp.eq.f32.partialorder %v1354, inf
      %v1371 = vsel %vm1370, %v1354, %v1369
      %vm1372 = vcmp.eq.f32.partialorder %v1354, 0.0
      %v1373 = vand.u32 %v1354, 2147483648
      %v1374 = vsel %vm1372, %v1373, %v1371
      %v1375 = vrsqrt.pop %v1355
      %v1376 = vmul.f32 %v1355, %v1375
      %vm1377 = vcmp.eq.f32.partialorder %v1355, inf
      %v1378 = vsel %vm1377, %v1355, %v1376
      %vm1379 = vcmp.eq.f32.partialorder %v1355, 0.0
      %v1380 = vand.u32 %v1355, 2147483648
      %v1381 = vsel %vm1379, %v1380, %v1378
      %v1382 = vrsqrt.pop %v1356
      %v1383 = vmul.f32 %v1356, %v1382
      %vm1384 = vcmp.eq.f32.partialorder %v1356, inf
      %v1385 = vsel %vm1384, %v1356, %v1383
      %vm1386 = vcmp.eq.f32.partialorder %v1356, 0.0
      %v1387 = vand.u32 %v1356, 2147483648
      %v1388 = vsel %vm1386, %v1387, %v1385
      %v1389 = vrsqrt.pop %v1357
      %v1390 = vmul.f32 %v1357, %v1389
      %vm1391 = vcmp.eq.f32.partialorder %v1357, inf
      %v1392 = vsel %vm1391, %v1357, %v1390
      %vm1393 = vcmp.eq.f32.partialorder %v1357, 0.0
      %v1394 = vand.u32 %v1357, 2147483648
      %v1395 = vsel %vm1393, %v1394, %v1392
      %v1396 = vrsqrt.pop %v1358
      %v1397 = vmul.f32 %v1358, %v1396
      %vm1398 = vcmp.eq.f32.partialorder %v1358, inf
      %v1399 = vsel %vm1398, %v1358, %v1397
      %vm1400 = vcmp.eq.f32.partialorder %v1358, 0.0
      %v1401 = vand.u32 %v1358, 2147483648
      %v1402 = vsel %vm1400, %v1401, %v1399
      %v1403 = vrsqrt.pop %v1359
      %v1404 = vmul.f32 %v1359, %v1403
      %vm1405 = vcmp.eq.f32.partialorder %v1359, inf
      %v1406 = vsel %vm1405, %v1359, %v1404
      %vm1407 = vcmp.eq.f32.partialorder %v1359, 0.0
      %v1408 = vand.u32 %v1359, 2147483648
      %v1409 = vsel %vm1407, %v1408, %v1406
      %v1410 = vrsqrt.pop %v1360
      %v1411 = vmul.f32 %v1360, %v1410
      %vm1412 = vcmp.eq.f32.partialorder %v1360, inf
      %v1413 = vsel %vm1412, %v1360, %v1411
      %vm1414 = vcmp.eq.f32.partialorder %v1360, 0.0
      %v1415 = vand.u32 %v1360, 2147483648
      %v1416 = vsel %vm1414, %v1415, %v1413
      %v1417 = vmul.f32 %v1279, %v1279
      %v1418 = vmul.f32 %v1280, %v1280
      %v1419 = vmul.f32 %v1281, %v1281
      %v1420 = vmul.f32 %v1282, %v1282
      %v1421 = vmul.f32 %v1283, %v1283
      %v1422 = vmul.f32 %v1284, %v1284
      %v1423 = vmul.f32 %v1285, %v1285
      %v1424 = vmul.f32 %v1286, %v1286
      %v1425 = vmul.f32 %v1329, %v1329
      %v1426 = vmul.f32 %v1330, %v1330
      %v1427 = vmul.f32 %v1331, %v1331
      %v1428 = vmul.f32 %v1332, %v1332
      %v1429 = vmul.f32 %v1333, %v1333
      %v1430 = vmul.f32 %v1334, %v1334
      %v1431 = vmul.f32 %v1335, %v1335
      %v1432 = vmul.f32 %v1336, %v1336
      %v1433 = vadd.f32 %v1417, %v1425
      %v1434 = vadd.f32 %v1418, %v1426
      %v1435 = vadd.f32 %v1419, %v1427
      %v1436 = vadd.f32 %v1420, %v1428
      %v1437 = vadd.f32 %v1421, %v1429
      %v1438 = vadd.f32 %v1422, %v1430
      %v1439 = vadd.f32 %v1423, %v1431
      %v1440 = vadd.f32 %v1424, %v1432
      %v1441 = vrsqrt.pop %v1433
      %v1442 = vmul.f32 %v1433, %v1441
      %vm1443 = vcmp.eq.f32.partialorder %v1433, inf
      %v1444 = vsel %vm1443, %v1433, %v1442
      %vm1445 = vcmp.eq.f32.partialorder %v1433, 0.0
      %v1446 = vand.u32 %v1433, 2147483648
      %v1447 = vsel %vm1445, %v1446, %v1444
      %v1448 = vrsqrt.pop %v1434
      %v1449 = vmul.f32 %v1434, %v1448
      %vm1450 = vcmp.eq.f32.partialorder %v1434, inf
      %v1451 = vsel %vm1450, %v1434, %v1449
      %vm1452 = vcmp.eq.f32.partialorder %v1434, 0.0
      %v1453 = vand.u32 %v1434, 2147483648
      %v1454 = vsel %vm1452, %v1453, %v1451
      %v1455 = vrsqrt.pop %v1435
      %v1456 = vmul.f32 %v1435, %v1455
      %vm1457 = vcmp.eq.f32.partialorder %v1435, inf
      %v1458 = vsel %vm1457, %v1435, %v1456
      %vm1459 = vcmp.eq.f32.partialorder %v1435, 0.0
      %v1460 = vand.u32 %v1435, 2147483648
      %v1461 = vsel %vm1459, %v1460, %v1458
      %v1462 = vrsqrt.pop %v1436
      %v1463 = vmul.f32 %v1436, %v1462
      %vm1464 = vcmp.eq.f32.partialorder %v1436, inf
      %v1465 = vsel %vm1464, %v1436, %v1463
      %vm1466 = vcmp.eq.f32.partialorder %v1436, 0.0
      %v1467 = vand.u32 %v1436, 2147483648
      %v1468 = vsel %vm1466, %v1467, %v1465
      %v1469 = vrsqrt.pop %v1437
      %v1470 = vmul.f32 %v1437, %v1469
      %vm1471 = vcmp.eq.f32.partialorder %v1437, inf
      %v1472 = vsel %vm1471, %v1437, %v1470
      %vm1473 = vcmp.eq.f32.partialorder %v1437, 0.0
      %v1474 = vand.u32 %v1437, 2147483648
      %v1475 = vsel %vm1473, %v1474, %v1472
      %v1476 = vrsqrt.pop %v1438
      %v1477 = vmul.f32 %v1438, %v1476
      %vm1478 = vcmp.eq.f32.partialorder %v1438, inf
      %v1479 = vsel %vm1478, %v1438, %v1477
      %vm1480 = vcmp.eq.f32.partialorder %v1438, 0.0
      %v1481 = vand.u32 %v1438, 2147483648
      %v1482 = vsel %vm1480, %v1481, %v1479
      %v1483 = vrsqrt.pop %v1439
      %v1484 = vmul.f32 %v1439, %v1483
      %vm1485 = vcmp.eq.f32.partialorder %v1439, inf
      %v1486 = vsel %vm1485, %v1439, %v1484
      %vm1487 = vcmp.eq.f32.partialorder %v1439, 0.0
      %v1488 = vand.u32 %v1439, 2147483648
      %v1489 = vsel %vm1487, %v1488, %v1486
      %v1490 = vrsqrt.pop %v1440
      %v1491 = vmul.f32 %v1440, %v1490
      %vm1492 = vcmp.eq.f32.partialorder %v1440, inf
      %v1493 = vsel %vm1492, %v1440, %v1491
      %vm1494 = vcmp.eq.f32.partialorder %v1440, 0.0
      %v1495 = vand.u32 %v1440, 2147483648
      %v1496 = vsel %vm1494, %v1495, %v1493
      %v1497 = vsub.f32 %v1367, %v1447
      %v1498 = vsub.f32 %v1374, %v1454
      %v1499 = vsub.f32 %v1381, %v1461
      %v1500 = vsub.f32 %v1388, %v1468
      %v1501 = vsub.f32 %v1395, %v1475
      %v1502 = vsub.f32 %v1402, %v1482
      %v1503 = vsub.f32 %v1409, %v1489
      %v1504 = vsub.f32 %v1416, %v1496
      %v1505 = vand.u32 2147483647, %v1497
      %v1506 = vand.u32 2147483647, %v1498
      %v1507 = vand.u32 2147483647, %v1499
      %v1508 = vand.u32 2147483647, %v1500
      %v1509 = vand.u32 2147483647, %v1501
      %v1510 = vand.u32 2147483647, %v1502
      %v1511 = vand.u32 2147483647, %v1503
      %v1512 = vand.u32 2147483647, %v1504
      %v1513 = vand.u32 2147483647, %v1271
      %v1514 = vand.u32 2147483647, %v1272
      %v1515 = vand.u32 2147483647, %v1273
      %v1516 = vand.u32 2147483647, %v1274
      %v1517 = vand.u32 2147483647, %v1275
      %v1518 = vand.u32 2147483647, %v1276
      %v1519 = vand.u32 2147483647, %v1277
      %v1520 = vand.u32 2147483647, %v1278
      %v1521 = vand.u32 2147483647, %v1321
      %v1522 = vand.u32 2147483647, %v1322
      %v1523 = vand.u32 2147483647, %v1323
      %v1524 = vand.u32 2147483647, %v1324
      %v1525 = vand.u32 2147483647, %v1325
      %v1526 = vand.u32 2147483647, %v1326
      %v1527 = vand.u32 2147483647, %v1327
      %v1528 = vand.u32 2147483647, %v1328
      %vm1529 = vcmp.gt.f32.partialorder %v1521, %v1513
      %vm1530 = vcmp.gt.f32.partialorder %v1522, %v1514
      %vm1531 = vcmp.gt.f32.partialorder %v1523, %v1515
      %vm1532 = vcmp.gt.f32.partialorder %v1524, %v1516
      %vm1533 = vcmp.gt.f32.partialorder %v1525, %v1517
      %vm1534 = vcmp.gt.f32.partialorder %v1526, %v1518
      %vm1535 = vcmp.gt.f32.partialorder %v1527, %v1519
      %vm1536 = vcmp.gt.f32.partialorder %v1528, %v1520
      %v1537 = vmin.f32 %v1513, %v1521
      %v1538 = vmin.f32 %v1514, %v1522
      %v1539 = vmin.f32 %v1515, %v1523
      %v1540 = vmin.f32 %v1516, %v1524
      %v1541 = vmin.f32 %v1517, %v1525
      %v1542 = vmin.f32 %v1518, %v1526
      %v1543 = vmin.f32 %v1519, %v1527
      %v1544 = vmin.f32 %v1520, %v1528
      %v1545 = vmax.f32 %v1513, %v1521
      %v1546 = vmax.f32 %v1514, %v1522
      %v1547 = vmax.f32 %v1515, %v1523
      %v1548 = vmax.f32 %v1516, %v1524
      %v1549 = vmax.f32 %v1517, %v1525
      %v1550 = vmax.f32 %v1518, %v1526
      %v1551 = vmax.f32 %v1519, %v1527
      %v1552 = vmax.f32 %v1520, %v1528
      %v1553 = vmul.f32 %v1545, 0.41421357
      %v1554 = vmul.f32 %v1546, 0.41421357
      %v1555 = vmul.f32 %v1547, 0.41421357
      %v1556 = vmul.f32 %v1548, 0.41421357
      %v1557 = vmul.f32 %v1549, 0.41421357
      %v1558 = vmul.f32 %v1550, 0.41421357
      %v1559 = vmul.f32 %v1551, 0.41421357
      %v1560 = vmul.f32 %v1552, 0.41421357
      %vm1561 = vcmp.gt.f32.partialorder %v1537, %v1553
      %vm1562 = vcmp.gt.f32.partialorder %v1538, %v1554
      %vm1563 = vcmp.gt.f32.partialorder %v1539, %v1555
      %vm1564 = vcmp.gt.f32.partialorder %v1540, %v1556
      %vm1565 = vcmp.gt.f32.partialorder %v1541, %v1557
      %vm1566 = vcmp.gt.f32.partialorder %v1542, %v1558
      %vm1567 = vcmp.gt.f32.partialorder %v1543, %v1559
      %vm1568 = vcmp.gt.f32.partialorder %v1544, %v1560
      %v1569 = vsub.f32 %v1537, %v1545
      %v1570 = vsub.f32 %v1538, %v1546
      %v1571 = vsub.f32 %v1539, %v1547
      %v1572 = vsub.f32 %v1540, %v1548
      %v1573 = vsub.f32 %v1541, %v1549
      %v1574 = vsub.f32 %v1542, %v1550
      %v1575 = vsub.f32 %v1543, %v1551
      %v1576 = vsub.f32 %v1544, %v1552
      %v1577 = vsel %vm1561, %v1569, %v1537
      %v1578 = vsel %vm1562, %v1570, %v1538
      %v1579 = vsel %vm1563, %v1571, %v1539
      %v1580 = vsel %vm1564, %v1572, %v1540
      %v1581 = vsel %vm1565, %v1573, %v1541
      %v1582 = vsel %vm1566, %v1574, %v1542
      %v1583 = vsel %vm1567, %v1575, %v1543
      %v1584 = vsel %vm1568, %v1576, %v1544
      %v1585 = vadd.f32 %v1537, %v1545
      %v1586 = vadd.f32 %v1538, %v1546
      %v1587 = vadd.f32 %v1539, %v1547
      %v1588 = vadd.f32 %v1540, %v1548
      %v1589 = vadd.f32 %v1541, %v1549
      %v1590 = vadd.f32 %v1542, %v1550
      %v1591 = vadd.f32 %v1543, %v1551
      %v1592 = vadd.f32 %v1544, %v1552
      %v1593 = vsel %vm1561, %v1585, %v1545
      %v1594 = vsel %vm1562, %v1586, %v1546
      %v1595 = vsel %vm1563, %v1587, %v1547
      %v1596 = vsel %vm1564, %v1588, %v1548
      %v1597 = vsel %vm1565, %v1589, %v1549
      %v1598 = vsel %vm1566, %v1590, %v1550
      %v1599 = vsel %vm1567, %v1591, %v1551
      %v1600 = vsel %vm1568, %v1592, %v1552
      %vm1601 = vcmp.eq.f32.partialorder %v1593, 0.0
      %vm1602 = vcmp.eq.f32.partialorder %v1594, 0.0
      %vm1603 = vcmp.eq.f32.partialorder %v1595, 0.0
      %vm1604 = vcmp.eq.f32.partialorder %v1596, 0.0
      %vm1605 = vcmp.eq.f32.partialorder %v1597, 0.0
      %vm1606 = vcmp.eq.f32.partialorder %v1598, 0.0
      %vm1607 = vcmp.eq.f32.partialorder %v1599, 0.0
      %vm1608 = vcmp.eq.f32.partialorder %v1600, 0.0
      %v1609 = vsel %vm1601, 1.0, %v1593
      %v1610 = vsel %vm1602, 1.0, %v1594
      %v1611 = vsel %vm1603, 1.0, %v1595
      %v1612 = vsel %vm1604, 1.0, %v1596
      %v1613 = vsel %vm1605, 1.0, %v1597
      %v1614 = vsel %vm1606, 1.0, %v1598
      %v1615 = vsel %vm1607, 1.0, %v1599
      %v1616 = vsel %vm1608, 1.0, %v1600
      %v1617 = vrcp.pop %v1609
      %v1618 = vmul.f32 %v1577, %v1617
      %v1619 = vrcp.pop %v1610
      %v1620 = vmul.f32 %v1578, %v1619
      %v1621 = vrcp.pop %v1611
      %v1622 = vmul.f32 %v1579, %v1621
      %v1623 = vrcp.pop %v1612
      %v1624 = vmul.f32 %v1580, %v1623
      %v1625 = vrcp.pop %v1613
      %v1626 = vmul.f32 %v1581, %v1625
      %v1627 = vrcp.pop %v1614
      %v1628 = vmul.f32 %v1582, %v1627
      %v1629 = vrcp.pop %v1615
      %v1630 = vmul.f32 %v1583, %v1629
      %v1631 = vrcp.pop %v1616
      %v1632 = vmul.f32 %v1584, %v1631
      %v1633 = vmul.f32 %v1618, %v1618
      %v1634 = vmul.f32 %v1620, %v1620
      %v1635 = vmul.f32 %v1622, %v1622
      %v1636 = vmul.f32 %v1624, %v1624
      %v1637 = vmul.f32 %v1626, %v1626
      %v1638 = vmul.f32 %v1628, %v1628
      %v1639 = vmul.f32 %v1630, %v1630
      %v1640 = vmul.f32 %v1632, %v1632
      %v1641 = vmul.f32 %v1633, -0.09090909
      %v1642 = vmul.f32 %v1634, -0.09090909
      %v1643 = vmul.f32 %v1635, -0.09090909
      %v1644 = vmul.f32 %v1636, -0.09090909
      %v1645 = vmul.f32 %v1637, -0.09090909
      %v1646 = vmul.f32 %v1638, -0.09090909
      %v1647 = vmul.f32 %v1639, -0.09090909
      %v1648 = vmul.f32 %v1640, -0.09090909
      %v1649 = vadd.f32 %v1641, 0.11111111
      %v1650 = vadd.f32 %v1642, 0.11111111
      %v1651 = vadd.f32 %v1643, 0.11111111
      %v1652 = vadd.f32 %v1644, 0.11111111
      %v1653 = vadd.f32 %v1645, 0.11111111
      %v1654 = vadd.f32 %v1646, 0.11111111
      %v1655 = vadd.f32 %v1647, 0.11111111
      %v1656 = vadd.f32 %v1648, 0.11111111
      %v1657 = vmul.f32 %v1649, %v1633
      %v1658 = vmul.f32 %v1650, %v1634
      %v1659 = vmul.f32 %v1651, %v1635
      %v1660 = vmul.f32 %v1652, %v1636
      %v1661 = vmul.f32 %v1653, %v1637
      %v1662 = vmul.f32 %v1654, %v1638
      %v1663 = vmul.f32 %v1655, %v1639
      %v1664 = vmul.f32 %v1656, %v1640
      %v1665 = vadd.f32 %v1657, -0.14285715
      %v1666 = vadd.f32 %v1658, -0.14285715
      %v1667 = vadd.f32 %v1659, -0.14285715
      %v1668 = vadd.f32 %v1660, -0.14285715
      %v1669 = vadd.f32 %v1661, -0.14285715
      %v1670 = vadd.f32 %v1662, -0.14285715
      %v1671 = vadd.f32 %v1663, -0.14285715
      %v1672 = vadd.f32 %v1664, -0.14285715
      %v1673 = vmul.f32 %v1665, %v1633
      %v1674 = vmul.f32 %v1666, %v1634
      %v1675 = vmul.f32 %v1667, %v1635
      %v1676 = vmul.f32 %v1668, %v1636
      %v1677 = vmul.f32 %v1669, %v1637
      %v1678 = vmul.f32 %v1670, %v1638
      %v1679 = vmul.f32 %v1671, %v1639
      %v1680 = vmul.f32 %v1672, %v1640
      %v1681 = vadd.f32 %v1673, 0.2
      %v1682 = vadd.f32 %v1674, 0.2
      %v1683 = vadd.f32 %v1675, 0.2
      %v1684 = vadd.f32 %v1676, 0.2
      %v1685 = vadd.f32 %v1677, 0.2
      %v1686 = vadd.f32 %v1678, 0.2
      %v1687 = vadd.f32 %v1679, 0.2
      %v1688 = vadd.f32 %v1680, 0.2
      %v1689 = vmul.f32 %v1681, %v1633
      %v1690 = vmul.f32 %v1682, %v1634
      %v1691 = vmul.f32 %v1683, %v1635
      %v1692 = vmul.f32 %v1684, %v1636
      %v1693 = vmul.f32 %v1685, %v1637
      %v1694 = vmul.f32 %v1686, %v1638
      %v1695 = vmul.f32 %v1687, %v1639
      %v1696 = vmul.f32 %v1688, %v1640
      %v1697 = vadd.f32 %v1689, -0.33333334
      %v1698 = vadd.f32 %v1690, -0.33333334
      %v1699 = vadd.f32 %v1691, -0.33333334
      %v1700 = vadd.f32 %v1692, -0.33333334
      %v1701 = vadd.f32 %v1693, -0.33333334
      %v1702 = vadd.f32 %v1694, -0.33333334
      %v1703 = vadd.f32 %v1695, -0.33333334
      %v1704 = vadd.f32 %v1696, -0.33333334
      %v1705 = vmul.f32 %v1697, %v1633
      %v1706 = vmul.f32 %v1698, %v1634
      %v1707 = vmul.f32 %v1699, %v1635
      %v1708 = vmul.f32 %v1700, %v1636
      %v1709 = vmul.f32 %v1701, %v1637
      %v1710 = vmul.f32 %v1702, %v1638
      %v1711 = vmul.f32 %v1703, %v1639
      %v1712 = vmul.f32 %v1704, %v1640
      %v1713 = vadd.f32 %v1705, 1.0
      %v1714 = vadd.f32 %v1706, 1.0
      %v1715 = vadd.f32 %v1707, 1.0
      %v1716 = vadd.f32 %v1708, 1.0
      %v1717 = vadd.f32 %v1709, 1.0
      %v1718 = vadd.f32 %v1710, 1.0
      %v1719 = vadd.f32 %v1711, 1.0
      %v1720 = vadd.f32 %v1712, 1.0
      %v1721 = vmul.f32 %v1618, %v1713
      %v1722 = vmul.f32 %v1620, %v1714
      %v1723 = vmul.f32 %v1622, %v1715
      %v1724 = vmul.f32 %v1624, %v1716
      %v1725 = vmul.f32 %v1626, %v1717
      %v1726 = vmul.f32 %v1628, %v1718
      %v1727 = vmul.f32 %v1630, %v1719
      %v1728 = vmul.f32 %v1632, %v1720
      %v1729 = vadd.f32 %v1721, 0.7853982
      %v1730 = vadd.f32 %v1722, 0.7853982
      %v1731 = vadd.f32 %v1723, 0.7853982
      %v1732 = vadd.f32 %v1724, 0.7853982
      %v1733 = vadd.f32 %v1725, 0.7853982
      %v1734 = vadd.f32 %v1726, 0.7853982
      %v1735 = vadd.f32 %v1727, 0.7853982
      %v1736 = vadd.f32 %v1728, 0.7853982
      %v1737 = vsel %vm1561, %v1729, %v1721
      %v1738 = vsel %vm1562, %v1730, %v1722
      %v1739 = vsel %vm1563, %v1731, %v1723
      %v1740 = vsel %vm1564, %v1732, %v1724
      %v1741 = vsel %vm1565, %v1733, %v1725
      %v1742 = vsel %vm1566, %v1734, %v1726
      %v1743 = vsel %vm1567, %v1735, %v1727
      %v1744 = vsel %vm1568, %v1736, %v1728
      %v1745 = vsub.f32 1.5707964, %v1737
      %v1746 = vsub.f32 1.5707964, %v1738
      %v1747 = vsub.f32 1.5707964, %v1739
      %v1748 = vsub.f32 1.5707964, %v1740
      %v1749 = vsub.f32 1.5707964, %v1741
      %v1750 = vsub.f32 1.5707964, %v1742
      %v1751 = vsub.f32 1.5707964, %v1743
      %v1752 = vsub.f32 1.5707964, %v1744
      %v1753 = vsel %vm1529, %v1745, %v1737
      %v1754 = vsel %vm1530, %v1746, %v1738
      %v1755 = vsel %vm1531, %v1747, %v1739
      %v1756 = vsel %vm1532, %v1748, %v1740
      %v1757 = vsel %vm1533, %v1749, %v1741
      %v1758 = vsel %vm1534, %v1750, %v1742
      %v1759 = vsel %vm1535, %v1751, %v1743
      %v1760 = vsel %vm1536, %v1752, %v1744
      %vm1761 = vcmp.lt.f32.partialorder %v1271, 0.0
      %vm1762 = vcmp.lt.f32.partialorder %v1272, 0.0
      %vm1763 = vcmp.lt.f32.partialorder %v1273, 0.0
      %vm1764 = vcmp.lt.f32.partialorder %v1274, 0.0
      %vm1765 = vcmp.lt.f32.partialorder %v1275, 0.0
      %vm1766 = vcmp.lt.f32.partialorder %v1276, 0.0
      %vm1767 = vcmp.lt.f32.partialorder %v1277, 0.0
      %vm1768 = vcmp.lt.f32.partialorder %v1278, 0.0
      %v1769 = vsub.f32 3.1415927, %v1753
      %v1770 = vsub.f32 3.1415927, %v1754
      %v1771 = vsub.f32 3.1415927, %v1755
      %v1772 = vsub.f32 3.1415927, %v1756
      %v1773 = vsub.f32 3.1415927, %v1757
      %v1774 = vsub.f32 3.1415927, %v1758
      %v1775 = vsub.f32 3.1415927, %v1759
      %v1776 = vsub.f32 3.1415927, %v1760
      %v1777 = vsel %vm1761, %v1769, %v1753
      %v1778 = vsel %vm1762, %v1770, %v1754
      %v1779 = vsel %vm1763, %v1771, %v1755
      %v1780 = vsel %vm1764, %v1772, %v1756
      %v1781 = vsel %vm1765, %v1773, %v1757
      %v1782 = vsel %vm1766, %v1774, %v1758
      %v1783 = vsel %vm1767, %v1775, %v1759
      %v1784 = vsel %vm1768, %v1776, %v1760
      %vm1785 = vcmp.lt.f32.partialorder %v1321, 0.0
      %vm1786 = vcmp.lt.f32.partialorder %v1322, 0.0
      %vm1787 = vcmp.lt.f32.partialorder %v1323, 0.0
      %vm1788 = vcmp.lt.f32.partialorder %v1324, 0.0
      %vm1789 = vcmp.lt.f32.partialorder %v1325, 0.0
      %vm1790 = vcmp.lt.f32.partialorder %v1326, 0.0
      %vm1791 = vcmp.lt.f32.partialorder %v1327, 0.0
      %vm1792 = vcmp.lt.f32.partialorder %v1328, 0.0
      %v1793 = vsub.f32 0.0, %v1777
      %v1794 = vsub.f32 0.0, %v1778
      %v1795 = vsub.f32 0.0, %v1779
      %v1796 = vsub.f32 0.0, %v1780
      %v1797 = vsub.f32 0.0, %v1781
      %v1798 = vsub.f32 0.0, %v1782
      %v1799 = vsub.f32 0.0, %v1783
      %v1800 = vsub.f32 0.0, %v1784
      %v1801 = vsel %vm1785, %v1793, %v1777
      %v1802 = vsel %vm1786, %v1794, %v1778
      %v1803 = vsel %vm1787, %v1795, %v1779
      %v1804 = vsel %vm1788, %v1796, %v1780
      %v1805 = vsel %vm1789, %v1797, %v1781
      %v1806 = vsel %vm1790, %v1798, %v1782
      %v1807 = vsel %vm1791, %v1799, %v1783
      %v1808 = vsel %vm1792, %v1800, %v1784
      %vm1809 = vcmp.eq.f32.partialorder %v1513, 0.0
      %vm1810 = vcmp.eq.f32.partialorder %v1514, 0.0
      %vm1811 = vcmp.eq.f32.partialorder %v1515, 0.0
      %vm1812 = vcmp.eq.f32.partialorder %v1516, 0.0
      %vm1813 = vcmp.eq.f32.partialorder %v1517, 0.0
      %vm1814 = vcmp.eq.f32.partialorder %v1518, 0.0
      %vm1815 = vcmp.eq.f32.partialorder %v1519, 0.0
      %vm1816 = vcmp.eq.f32.partialorder %v1520, 0.0
      %vm1817 = vcmp.eq.f32.partialorder %v1521, 0.0
      %vm1818 = vcmp.eq.f32.partialorder %v1522, 0.0
      %vm1819 = vcmp.eq.f32.partialorder %v1523, 0.0
      %vm1820 = vcmp.eq.f32.partialorder %v1524, 0.0
      %vm1821 = vcmp.eq.f32.partialorder %v1525, 0.0
      %vm1822 = vcmp.eq.f32.partialorder %v1526, 0.0
      %vm1823 = vcmp.eq.f32.partialorder %v1527, 0.0
      %vm1824 = vcmp.eq.f32.partialorder %v1528, 0.0
      %vm1825 = vmand %vm1809, %vm1817
      %vm1826 = vmand %vm1810, %vm1818
      %vm1827 = vmand %vm1811, %vm1819
      %vm1828 = vmand %vm1812, %vm1820
      %vm1829 = vmand %vm1813, %vm1821
      %vm1830 = vmand %vm1814, %vm1822
      %vm1831 = vmand %vm1815, %vm1823
      %vm1832 = vmand %vm1816, %vm1824
      %v1833 = vsel %vm1825, 0.0, %v1801
      %v1834 = vsel %vm1826, 0.0, %v1802
      %v1835 = vsel %vm1827, 0.0, %v1803
      %v1836 = vsel %vm1828, 0.0, %v1804
      %v1837 = vsel %vm1829, 0.0, %v1805
      %v1838 = vsel %vm1830, 0.0, %v1806
      %v1839 = vsel %vm1831, 0.0, %v1807
      %v1840 = vsel %vm1832, 0.0, %v1808
      %v1841 = vand.u32 2147483647, %v1279
      %v1842 = vand.u32 2147483647, %v1280
      %v1843 = vand.u32 2147483647, %v1281
      %v1844 = vand.u32 2147483647, %v1282
      %v1845 = vand.u32 2147483647, %v1283
      %v1846 = vand.u32 2147483647, %v1284
      %v1847 = vand.u32 2147483647, %v1285
      %v1848 = vand.u32 2147483647, %v1286
      %v1849 = vand.u32 2147483647, %v1329
      %v1850 = vand.u32 2147483647, %v1330
      %v1851 = vand.u32 2147483647, %v1331
      %v1852 = vand.u32 2147483647, %v1332
      %v1853 = vand.u32 2147483647, %v1333
      %v1854 = vand.u32 2147483647, %v1334
      %v1855 = vand.u32 2147483647, %v1335
      %v1856 = vand.u32 2147483647, %v1336
      %vm1857 = vcmp.gt.f32.partialorder %v1849, %v1841
      %vm1858 = vcmp.gt.f32.partialorder %v1850, %v1842
      %vm1859 = vcmp.gt.f32.partialorder %v1851, %v1843
      %vm1860 = vcmp.gt.f32.partialorder %v1852, %v1844
      %vm1861 = vcmp.gt.f32.partialorder %v1853, %v1845
      %vm1862 = vcmp.gt.f32.partialorder %v1854, %v1846
      %vm1863 = vcmp.gt.f32.partialorder %v1855, %v1847
      %vm1864 = vcmp.gt.f32.partialorder %v1856, %v1848
      %v1865 = vmin.f32 %v1841, %v1849
      %v1866 = vmin.f32 %v1842, %v1850
      %v1867 = vmin.f32 %v1843, %v1851
      %v1868 = vmin.f32 %v1844, %v1852
      %v1869 = vmin.f32 %v1845, %v1853
      %v1870 = vmin.f32 %v1846, %v1854
      %v1871 = vmin.f32 %v1847, %v1855
      %v1872 = vmin.f32 %v1848, %v1856
      %v1873 = vmax.f32 %v1841, %v1849
      %v1874 = vmax.f32 %v1842, %v1850
      %v1875 = vmax.f32 %v1843, %v1851
      %v1876 = vmax.f32 %v1844, %v1852
      %v1877 = vmax.f32 %v1845, %v1853
      %v1878 = vmax.f32 %v1846, %v1854
      %v1879 = vmax.f32 %v1847, %v1855
      %v1880 = vmax.f32 %v1848, %v1856
      %v1881 = vmul.f32 %v1873, 0.41421357
      %v1882 = vmul.f32 %v1874, 0.41421357
      %v1883 = vmul.f32 %v1875, 0.41421357
      %v1884 = vmul.f32 %v1876, 0.41421357
      %v1885 = vmul.f32 %v1877, 0.41421357
      %v1886 = vmul.f32 %v1878, 0.41421357
      %v1887 = vmul.f32 %v1879, 0.41421357
      %v1888 = vmul.f32 %v1880, 0.41421357
      %vm1889 = vcmp.gt.f32.partialorder %v1865, %v1881
      %vm1890 = vcmp.gt.f32.partialorder %v1866, %v1882
      %vm1891 = vcmp.gt.f32.partialorder %v1867, %v1883
      %vm1892 = vcmp.gt.f32.partialorder %v1868, %v1884
      %vm1893 = vcmp.gt.f32.partialorder %v1869, %v1885
      %vm1894 = vcmp.gt.f32.partialorder %v1870, %v1886
      %vm1895 = vcmp.gt.f32.partialorder %v1871, %v1887
      %vm1896 = vcmp.gt.f32.partialorder %v1872, %v1888
      %v1897 = vsub.f32 %v1865, %v1873
      %v1898 = vsub.f32 %v1866, %v1874
      %v1899 = vsub.f32 %v1867, %v1875
      %v1900 = vsub.f32 %v1868, %v1876
      %v1901 = vsub.f32 %v1869, %v1877
      %v1902 = vsub.f32 %v1870, %v1878
      %v1903 = vsub.f32 %v1871, %v1879
      %v1904 = vsub.f32 %v1872, %v1880
      %v1905 = vsel %vm1889, %v1897, %v1865
      %v1906 = vsel %vm1890, %v1898, %v1866
      %v1907 = vsel %vm1891, %v1899, %v1867
      %v1908 = vsel %vm1892, %v1900, %v1868
      %v1909 = vsel %vm1893, %v1901, %v1869
      %v1910 = vsel %vm1894, %v1902, %v1870
      %v1911 = vsel %vm1895, %v1903, %v1871
      %v1912 = vsel %vm1896, %v1904, %v1872
      %v1913 = vadd.f32 %v1865, %v1873
      %v1914 = vadd.f32 %v1866, %v1874
      %v1915 = vadd.f32 %v1867, %v1875
      %v1916 = vadd.f32 %v1868, %v1876
      %v1917 = vadd.f32 %v1869, %v1877
      %v1918 = vadd.f32 %v1870, %v1878
      %v1919 = vadd.f32 %v1871, %v1879
      %v1920 = vadd.f32 %v1872, %v1880
      %v1921 = vsel %vm1889, %v1913, %v1873
      %v1922 = vsel %vm1890, %v1914, %v1874
      %v1923 = vsel %vm1891, %v1915, %v1875
      %v1924 = vsel %vm1892, %v1916, %v1876
      %v1925 = vsel %vm1893, %v1917, %v1877
      %v1926 = vsel %vm1894, %v1918, %v1878
      %v1927 = vsel %vm1895, %v1919, %v1879
      %v1928 = vsel %vm1896, %v1920, %v1880
      %vm1929 = vcmp.eq.f32.partialorder %v1921, 0.0
      %vm1930 = vcmp.eq.f32.partialorder %v1922, 0.0
      %vm1931 = vcmp.eq.f32.partialorder %v1923, 0.0
      %vm1932 = vcmp.eq.f32.partialorder %v1924, 0.0
      %vm1933 = vcmp.eq.f32.partialorder %v1925, 0.0
      %vm1934 = vcmp.eq.f32.partialorder %v1926, 0.0
      %vm1935 = vcmp.eq.f32.partialorder %v1927, 0.0
      %vm1936 = vcmp.eq.f32.partialorder %v1928, 0.0
      %v1937 = vsel %vm1929, 1.0, %v1921
      %v1938 = vsel %vm1930, 1.0, %v1922
      %v1939 = vsel %vm1931, 1.0, %v1923
      %v1940 = vsel %vm1932, 1.0, %v1924
      %v1941 = vsel %vm1933, 1.0, %v1925
      %v1942 = vsel %vm1934, 1.0, %v1926
      %v1943 = vsel %vm1935, 1.0, %v1927
      %v1944 = vsel %vm1936, 1.0, %v1928
      %v1945 = vrcp.pop %v1937
      %v1946 = vmul.f32 %v1905, %v1945
      %v1947 = vrcp.pop %v1938
      %v1948 = vmul.f32 %v1906, %v1947
      %v1949 = vrcp.pop %v1939
      %v1950 = vmul.f32 %v1907, %v1949
      %v1951 = vrcp.pop %v1940
      %v1952 = vmul.f32 %v1908, %v1951
      %v1953 = vrcp.pop %v1941
      %v1954 = vmul.f32 %v1909, %v1953
      %v1955 = vrcp.pop %v1942
      %v1956 = vmul.f32 %v1910, %v1955
      %v1957 = vrcp.pop %v1943
      %v1958 = vmul.f32 %v1911, %v1957
      %v1959 = vrcp.pop %v1944
      %v1960 = vmul.f32 %v1912, %v1959
      %v1961 = vmul.f32 %v1946, %v1946
      %v1962 = vmul.f32 %v1948, %v1948
      %v1963 = vmul.f32 %v1950, %v1950
      %v1964 = vmul.f32 %v1952, %v1952
      %v1965 = vmul.f32 %v1954, %v1954
      %v1966 = vmul.f32 %v1956, %v1956
      %v1967 = vmul.f32 %v1958, %v1958
      %v1968 = vmul.f32 %v1960, %v1960
      %v1969 = vmul.f32 %v1961, -0.09090909
      %v1970 = vmul.f32 %v1962, -0.09090909
      %v1971 = vmul.f32 %v1963, -0.09090909
      %v1972 = vmul.f32 %v1964, -0.09090909
      %v1973 = vmul.f32 %v1965, -0.09090909
      %v1974 = vmul.f32 %v1966, -0.09090909
      %v1975 = vmul.f32 %v1967, -0.09090909
      %v1976 = vmul.f32 %v1968, -0.09090909
      %v1977 = vadd.f32 %v1969, 0.11111111
      %v1978 = vadd.f32 %v1970, 0.11111111
      %v1979 = vadd.f32 %v1971, 0.11111111
      %v1980 = vadd.f32 %v1972, 0.11111111
      %v1981 = vadd.f32 %v1973, 0.11111111
      %v1982 = vadd.f32 %v1974, 0.11111111
      %v1983 = vadd.f32 %v1975, 0.11111111
      %v1984 = vadd.f32 %v1976, 0.11111111
      %v1985 = vmul.f32 %v1977, %v1961
      %v1986 = vmul.f32 %v1978, %v1962
      %v1987 = vmul.f32 %v1979, %v1963
      %v1988 = vmul.f32 %v1980, %v1964
      %v1989 = vmul.f32 %v1981, %v1965
      %v1990 = vmul.f32 %v1982, %v1966
      %v1991 = vmul.f32 %v1983, %v1967
      %v1992 = vmul.f32 %v1984, %v1968
      %v1993 = vadd.f32 %v1985, -0.14285715
      %v1994 = vadd.f32 %v1986, -0.14285715
      %v1995 = vadd.f32 %v1987, -0.14285715
      %v1996 = vadd.f32 %v1988, -0.14285715
      %v1997 = vadd.f32 %v1989, -0.14285715
      %v1998 = vadd.f32 %v1990, -0.14285715
      %v1999 = vadd.f32 %v1991, -0.14285715
      %v2000 = vadd.f32 %v1992, -0.14285715
      %v2001 = vmul.f32 %v1993, %v1961
      %v2002 = vmul.f32 %v1994, %v1962
      %v2003 = vmul.f32 %v1995, %v1963
      %v2004 = vmul.f32 %v1996, %v1964
      %v2005 = vmul.f32 %v1997, %v1965
      %v2006 = vmul.f32 %v1998, %v1966
      %v2007 = vmul.f32 %v1999, %v1967
      %v2008 = vmul.f32 %v2000, %v1968
      %v2009 = vadd.f32 %v2001, 0.2
      %v2010 = vadd.f32 %v2002, 0.2
      %v2011 = vadd.f32 %v2003, 0.2
      %v2012 = vadd.f32 %v2004, 0.2
      %v2013 = vadd.f32 %v2005, 0.2
      %v2014 = vadd.f32 %v2006, 0.2
      %v2015 = vadd.f32 %v2007, 0.2
      %v2016 = vadd.f32 %v2008, 0.2
      %v2017 = vmul.f32 %v2009, %v1961
      %v2018 = vmul.f32 %v2010, %v1962
      %v2019 = vmul.f32 %v2011, %v1963
      %v2020 = vmul.f32 %v2012, %v1964
      %v2021 = vmul.f32 %v2013, %v1965
      %v2022 = vmul.f32 %v2014, %v1966
      %v2023 = vmul.f32 %v2015, %v1967
      %v2024 = vmul.f32 %v2016, %v1968
      %v2025 = vadd.f32 %v2017, -0.33333334
      %v2026 = vadd.f32 %v2018, -0.33333334
      %v2027 = vadd.f32 %v2019, -0.33333334
      %v2028 = vadd.f32 %v2020, -0.33333334
      %v2029 = vadd.f32 %v2021, -0.33333334
      %v2030 = vadd.f32 %v2022, -0.33333334
      %v2031 = vadd.f32 %v2023, -0.33333334
      %v2032 = vadd.f32 %v2024, -0.33333334
      %v2033 = vmul.f32 %v2025, %v1961
      %v2034 = vmul.f32 %v2026, %v1962
      %v2035 = vmul.f32 %v2027, %v1963
      %v2036 = vmul.f32 %v2028, %v1964
      %v2037 = vmul.f32 %v2029, %v1965
      %v2038 = vmul.f32 %v2030, %v1966
      %v2039 = vmul.f32 %v2031, %v1967
      %v2040 = vmul.f32 %v2032, %v1968
      %v2041 = vadd.f32 %v2033, 1.0
      %v2042 = vadd.f32 %v2034, 1.0
      %v2043 = vadd.f32 %v2035, 1.0
      %v2044 = vadd.f32 %v2036, 1.0
      %v2045 = vadd.f32 %v2037, 1.0
      %v2046 = vadd.f32 %v2038, 1.0
      %v2047 = vadd.f32 %v2039, 1.0
      %v2048 = vadd.f32 %v2040, 1.0
      %v2049 = vmul.f32 %v1946, %v2041
      %v2050 = vmul.f32 %v1948, %v2042
      %v2051 = vmul.f32 %v1950, %v2043
      %v2052 = vmul.f32 %v1952, %v2044
      %v2053 = vmul.f32 %v1954, %v2045
      %v2054 = vmul.f32 %v1956, %v2046
      %v2055 = vmul.f32 %v1958, %v2047
      %v2056 = vmul.f32 %v1960, %v2048
      %v2057 = vadd.f32 %v2049, 0.7853982
      %v2058 = vadd.f32 %v2050, 0.7853982
      %v2059 = vadd.f32 %v2051, 0.7853982
      %v2060 = vadd.f32 %v2052, 0.7853982
      %v2061 = vadd.f32 %v2053, 0.7853982
      %v2062 = vadd.f32 %v2054, 0.7853982
      %v2063 = vadd.f32 %v2055, 0.7853982
      %v2064 = vadd.f32 %v2056, 0.7853982
      %v2065 = vsel %vm1889, %v2057, %v2049
      %v2066 = vsel %vm1890, %v2058, %v2050
      %v2067 = vsel %vm1891, %v2059, %v2051
      %v2068 = vsel %vm1892, %v2060, %v2052
      %v2069 = vsel %vm1893, %v2061, %v2053
      %v2070 = vsel %vm1894, %v2062, %v2054
      %v2071 = vsel %vm1895, %v2063, %v2055
      %v2072 = vsel %vm1896, %v2064, %v2056
      %v2073 = vsub.f32 1.5707964, %v2065
      %v2074 = vsub.f32 1.5707964, %v2066
      %v2075 = vsub.f32 1.5707964, %v2067
      %v2076 = vsub.f32 1.5707964, %v2068
      %v2077 = vsub.f32 1.5707964, %v2069
      %v2078 = vsub.f32 1.5707964, %v2070
      %v2079 = vsub.f32 1.5707964, %v2071
      %v2080 = vsub.f32 1.5707964, %v2072
      %v2081 = vsel %vm1857, %v2073, %v2065
      %v2082 = vsel %vm1858, %v2074, %v2066
      %v2083 = vsel %vm1859, %v2075, %v2067
      %v2084 = vsel %vm1860, %v2076, %v2068
      %v2085 = vsel %vm1861, %v2077, %v2069
      %v2086 = vsel %vm1862, %v2078, %v2070
      %v2087 = vsel %vm1863, %v2079, %v2071
      %v2088 = vsel %vm1864, %v2080, %v2072
      %vm2089 = vcmp.lt.f32.partialorder %v1279, 0.0
      %vm2090 = vcmp.lt.f32.partialorder %v1280, 0.0
      %vm2091 = vcmp.lt.f32.partialorder %v1281, 0.0
      %vm2092 = vcmp.lt.f32.partialorder %v1282, 0.0
      %vm2093 = vcmp.lt.f32.partialorder %v1283, 0.0
      %vm2094 = vcmp.lt.f32.partialorder %v1284, 0.0
      %vm2095 = vcmp.lt.f32.partialorder %v1285, 0.0
      %vm2096 = vcmp.lt.f32.partialorder %v1286, 0.0
      %v2097 = vsub.f32 3.1415927, %v2081
      %v2098 = vsub.f32 3.1415927, %v2082
      %v2099 = vsub.f32 3.1415927, %v2083
      %v2100 = vsub.f32 3.1415927, %v2084
      %v2101 = vsub.f32 3.1415927, %v2085
      %v2102 = vsub.f32 3.1415927, %v2086
      %v2103 = vsub.f32 3.1415927, %v2087
      %v2104 = vsub.f32 3.1415927, %v2088
      %v2105 = vsel %vm2089, %v2097, %v2081
      %v2106 = vsel %vm2090, %v2098, %v2082
      %v2107 = vsel %vm2091, %v2099, %v2083
      %v2108 = vsel %vm2092, %v2100, %v2084
      %v2109 = vsel %vm2093, %v2101, %v2085
      %v2110 = vsel %vm2094, %v2102, %v2086
      %v2111 = vsel %vm2095, %v2103, %v2087
      %v2112 = vsel %vm2096, %v2104, %v2088
      %vm2113 = vcmp.lt.f32.partialorder %v1329, 0.0
      %vm2114 = vcmp.lt.f32.partialorder %v1330, 0.0
      %vm2115 = vcmp.lt.f32.partialorder %v1331, 0.0
      %vm2116 = vcmp.lt.f32.partialorder %v1332, 0.0
      %vm2117 = vcmp.lt.f32.partialorder %v1333, 0.0
      %vm2118 = vcmp.lt.f32.partialorder %v1334, 0.0
      %vm2119 = vcmp.lt.f32.partialorder %v1335, 0.0
      %vm2120 = vcmp.lt.f32.partialorder %v1336, 0.0
      %v2121 = vsub.f32 0.0, %v2105
      %v2122 = vsub.f32 0.0, %v2106
      %v2123 = vsub.f32 0.0, %v2107
      %v2124 = vsub.f32 0.0, %v2108
      %v2125 = vsub.f32 0.0, %v2109
      %v2126 = vsub.f32 0.0, %v2110
      %v2127 = vsub.f32 0.0, %v2111
      %v2128 = vsub.f32 0.0, %v2112
      %v2129 = vsel %vm2113, %v2121, %v2105
      %v2130 = vsel %vm2114, %v2122, %v2106
      %v2131 = vsel %vm2115, %v2123, %v2107
      %v2132 = vsel %vm2116, %v2124, %v2108
      %v2133 = vsel %vm2117, %v2125, %v2109
      %v2134 = vsel %vm2118, %v2126, %v2110
      %v2135 = vsel %vm2119, %v2127, %v2111
      %v2136 = vsel %vm2120, %v2128, %v2112
      %vm2137 = vcmp.eq.f32.partialorder %v1841, 0.0
      %vm2138 = vcmp.eq.f32.partialorder %v1842, 0.0
      %vm2139 = vcmp.eq.f32.partialorder %v1843, 0.0
      %vm2140 = vcmp.eq.f32.partialorder %v1844, 0.0
      %vm2141 = vcmp.eq.f32.partialorder %v1845, 0.0
      %vm2142 = vcmp.eq.f32.partialorder %v1846, 0.0
      %vm2143 = vcmp.eq.f32.partialorder %v1847, 0.0
      %vm2144 = vcmp.eq.f32.partialorder %v1848, 0.0
      %vm2145 = vcmp.eq.f32.partialorder %v1849, 0.0
      %vm2146 = vcmp.eq.f32.partialorder %v1850, 0.0
      %vm2147 = vcmp.eq.f32.partialorder %v1851, 0.0
      %vm2148 = vcmp.eq.f32.partialorder %v1852, 0.0
      %vm2149 = vcmp.eq.f32.partialorder %v1853, 0.0
      %vm2150 = vcmp.eq.f32.partialorder %v1854, 0.0
      %vm2151 = vcmp.eq.f32.partialorder %v1855, 0.0
      %vm2152 = vcmp.eq.f32.partialorder %v1856, 0.0
      %vm2153 = vmand %vm2137, %vm2145
      %vm2154 = vmand %vm2138, %vm2146
      %vm2155 = vmand %vm2139, %vm2147
      %vm2156 = vmand %vm2140, %vm2148
      %vm2157 = vmand %vm2141, %vm2149
      %vm2158 = vmand %vm2142, %vm2150
      %vm2159 = vmand %vm2143, %vm2151
      %vm2160 = vmand %vm2144, %vm2152
      %v2161 = vsel %vm2153, 0.0, %v2129
      %v2162 = vsel %vm2154, 0.0, %v2130
      %v2163 = vsel %vm2155, 0.0, %v2131
      %v2164 = vsel %vm2156, 0.0, %v2132
      %v2165 = vsel %vm2157, 0.0, %v2133
      %v2166 = vsel %vm2158, 0.0, %v2134
      %v2167 = vsel %vm2159, 0.0, %v2135
      %v2168 = vsel %vm2160, 0.0, %v2136
      %v2169 = vsub.f32 %v1833, %v2161
      %v2170 = vsub.f32 %v1834, %v2162
      %v2171 = vsub.f32 %v1835, %v2163
      %v2172 = vsub.f32 %v1836, %v2164
      %v2173 = vsub.f32 %v1837, %v2165
      %v2174 = vsub.f32 %v1838, %v2166
      %v2175 = vsub.f32 %v1839, %v2167
      %v2176 = vsub.f32 %v1840, %v2168
      %v2177 = vand.u32 2147483647, %v2169
      %v2178 = vand.u32 2147483647, %v2170
      %v2179 = vand.u32 2147483647, %v2171
      %v2180 = vand.u32 2147483647, %v2172
      %v2181 = vand.u32 2147483647, %v2173
      %v2182 = vand.u32 2147483647, %v2174
      %v2183 = vand.u32 2147483647, %v2175
      %v2184 = vand.u32 2147483647, %v2176
      %v2185 = vadd.f32 %v1505, %v1506
      %v2186 = vadd.f32 %v2185, %v1507
      %v2187 = vadd.f32 %v2186, %v1508
      %v2188 = vadd.f32 %v2187, %v1509
      %v2189 = vadd.f32 %v2188, %v1510
      %v2190 = vadd.f32 %v2189, %v1511
      %v2191 = vadd.f32 %v2190, %v1512
      %2192 = vadd.xlane.f32.xlu0 %v2191
      %v2193 = vpop.xlane.xlu0 %2192
      %v2194 = vrot.slane %v2193, 4
      %v2195 = vadd.f32 %v2193, %v2194
      %v2196 = vrot.slane %v2195, 2
      %v2197 = vadd.f32 %v2195, %v2196
      %v2198 = vrot.slane %v2197, 1
      %v2199 = vadd.f32 %v2197, %v2198
      %s2200 = vtos %v2199
      %v2201 = vadd.f32 %v2177, %v2178
      %v2202 = vadd.f32 %v2201, %v2179
      %v2203 = vadd.f32 %v2202, %v2180
      %v2204 = vadd.f32 %v2203, %v2181
      %v2205 = vadd.f32 %v2204, %v2182
      %v2206 = vadd.f32 %v2205, %v2183
      %v2207 = vadd.f32 %v2206, %v2184
      %2208 = vadd.xlane.f32.xlu0 %v2207
      %v2209 = vpop.xlane.xlu0 %2208
      %v2210 = vrot.slane %v2209, 4
      %v2211 = vadd.f32 %v2209, %v2210
      %v2212 = vrot.slane %v2211, 2
      %v2213 = vadd.f32 %v2211, %v2212
      %v2214 = vrot.slane %v2213, 1
      %v2215 = vadd.f32 %v2213, %v2214
      %s2216 = vtos %v2215
      %v2217 = vstv %s2200
      %2218 = vst [vmem:[%s199] sm:$0xff] %v2217
      %v2219 = vstv %s2216
      %s2220 = scalar_lea.vmem %s199, 8
      %2221 = vst [vmem:[%s2220] sm:$0xff] %v2219
      %p2222 = scmp.lt.s32.totalorder %s15, 1
      %s2223 = scalar_select %p2222, %s15, 1
      %s2224 = smul.addr %s2223, 2
      %s2225 = smul.addr %s2224, 8
      %s2226 = scalar_lea.vmem %s4, %s2225
      // Predicated region
      $region37: #{fft_loss.1} parent=35 // pred_check
        %p2227 = pneg %p122
      $region38: #{fft_loss.1} parent=35 // pred_check_branch
        %2229 = sbr.rel (%p2227) target = $region40
      $region39: #{fft_loss.1} parent=35 // pred_region
        _
      $region40: #{fft_loss.1} parent=35 // pred_fallthru
        _
    $region36: #{fft_loss.1} parent=5 // pred_fallthru
      _
    %p2230 = scmp.le.s32.totalorder 2, %s10
    // Predicated region
    $region41: #{fft_loss.1} parent=5 // pred_check
      %p2231 = pneg %p2230
    $region42: #{fft_loss.1} parent=5 // pred_check_branch
      %2233 = sbr.rel (%p2231) target = $region44
    $region43: #{fft_loss.1} parent=5 // pred_region
      %s2234 = ssub.s32 %s10, 2
      // Predicated region
      $region45: #{fft_loss.1} parent=43 // pred_check
        %p2235 = pneg %p128
      $region46: #{fft_loss.1} parent=43 // pred_check_branch
        %2237 = sbr.rel (%p2235) target = $region48
      $region47: #{fft_loss.1} parent=43 // pred_region
        %p2238 = scmp.lt.s32.totalorder %s16, 1
        %s2239 = scalar_select %p2238, %s16, 1
        %s2240 = smul.addr %s2239, 2
        %s2241 = smul.addr %s2240, 8
        %s2242 = scalar_lea.vmem %s4, %s2241
      $region48: #{fft_loss.1} parent=43 // pred_fallthru
        _
    $region44: #{fft_loss.1} parent=5 // pred_fallthru
      _
  $region6: #{fft_loss.1} parent=0 // loop_footer
    %s14 = sadd.s32 1, %s10
  $region7: #{fft_loss.1} parent=0 // loop_footer_branch
    %9 = sbr.rel target = $region3
  $region8: #{fft_loss.1} parent=0 // loop_exit
    _

</llo_original>
